<compile_context>
chip_gen: v5e
topology: v5e:2x2
jax: 0.10.0
libtpu: 0.0.40
codegen_flags: <defaults>
</compile_context>

<pallas_src>
import functools
import math

import jax
import jax.numpy as jnp
from jax.experimental import pallas as pl
from jax.experimental.pallas import tpu as pltpu


def _linear_attention_kernel(x_ref, wf_ref, bf_ref, cos_ref, sin_ref,
                             mzb_ref, mkv_ref, lw_ref, lb_ref, valid_ref,
                             o_ref, *, W):
    Bt, N, Cp = x_ref.shape
    NB = Bt * N
    half = Cp // 2

    if Bt == 1:
        x = x_ref[0]                                   # (N, Cp) f32; also v
    else:
        x = x_ref[...].reshape(NB, Cp)
    x_b = x.astype(jnp.bfloat16)

    # Fused q|k projection: ONE bf16 MXU matmul with f32 accumulation.  Weight
    # columns are already de-interleaved (padded half-split RoPE layout) and
    # zero-padded on the wrapper side.
    qk = jnp.dot(x_b, wf_ref[...], preferred_element_type=jnp.float32) + bf_ref[...]
    # ELU(.) + 1 on the lane-dense fused slab (clamp the dead branch of exp).
    qk = jnp.where(qk > 0, qk, jnp.exp(jnp.minimum(qk, 0.0)) - 1.0) + 1.0
    q = qk[:, :Cp]
    k = qk[:, Cp:]

    # RoPE in padded half-split layout: partner lane sits at +/- Cp/2; the sign
    # pattern is folded into the sin table, so one roll + two multiplies per tensor.
    cos_f = cos_ref[...]                               # (NB, Cp)
    sin_f = sin_ref[...]                               # (NB, Cp), signed

    def rope(t):
        return t * cos_f + pltpu.roll(t, half, axis=1) * sin_f

    qr_b = rope(q).astype(jnp.bfloat16)
    kr_b = rope(k).astype(jnp.bfloat16)

    # LePE: depthwise 3x3 conv (padding=1, groups=C) on v viewed as (H, W, C),
    # computed on the flat (NB, Cp) layout via circular sublane shifts.  Boundary
    # validity comes from a precomputed (9, NB, 1) table, so invalid taps (incl.
    # anything that would leak across images when Bt > 1) are masked to zero.
    conv = jnp.zeros((NB, Cp), jnp.float32)
    kidx = 0
    for dy in (-1, 0, 1):
        for dx in (-1, 0, 1):
            s_off = dy * W + dx
            w_tap = lw_ref[kidx:kidx + 1, :]                        # (1, Cp)
            valid = valid_ref[kidx]                                 # (NB, 1)
            shifted = x if s_off == 0 else pltpu.roll(x, (-s_off) % NB, axis=0)
            conv = conv + shifted * (w_tap * valid)
            kidx += 1

    # Per-image linear attention (static unrolled loop; Bt = 1 in the default
    # configuration so this is a single pass).
    for bi in range(Bt):
        r0 = bi * N
        q_i = q[r0:r0 + N]
        k_i = k[r0:r0 + N]
        qr_i = qr_b[r0:r0 + N]
        kr_i = kr_b[r0:r0 + N]
        v_i = x_b[r0:r0 + N]

        # z denominator for all heads at once: one sublane reduction + one mask
        # matmul (head structure carried by mzb; pad lanes masked out).
        # TODO(synk): for production N >> C, fold k_mean into the (Cp, Cp) mask
        # (mz = mzb * k_mean_col) to replace this (N, Cp) multiply + cast.
        k_mean = jnp.mean(k_i, axis=0, keepdims=True)               # (1, Cp)
        s_b = (q_i * k_mean).astype(jnp.bfloat16)
        denom = jnp.dot(s_b, mzb_ref[...], preferred_element_type=jnp.float32)

        # kv[p, c] = sum_n k_rope[n, p] * v[n, c]; head mask and the 1/N scale
        # are pre-folded into mkv, so no operand scaling of (N, Cp) tensors.
        kv = jax.lax.dot_general(kr_i, v_i, (((0,), (0,)), ((), ())),
                                 preferred_element_type=jnp.float32)  # (Cp, Cp)
        kv_b = (kv * mkv_ref[...]).astype(jnp.bfloat16)

        attn = jnp.dot(qr_i, kv_b, preferred_element_type=jnp.float32)  # (N, Cp)
        attn = attn * pl.reciprocal(denom + 1e-6, approx=True)

        # Lane-dense store (Cp is a multiple of 128): attention + LePE + bias.
        o_ref[bi] = attn + conv[r0:r0 + N] + lb_ref[...]


def _rope_half_tables(H, W, C, base=10000.0):
    # Matches RoPE.__init__ with shape=(H, W, C): k_max = C // (2 * 2)
    k_max = C // 4
    theta = 1.0 / (base ** (jnp.arange(k_max, dtype=jnp.float32) / k_max))
    ys, xs = jnp.meshgrid(jnp.arange(H, dtype=jnp.float32),
                          jnp.arange(W, dtype=jnp.float32), indexing="ij")
    angles = jnp.concatenate([ys[..., None] * theta, xs[..., None] * theta],
                             axis=-1).reshape(H * W, C // 2)
    return jnp.cos(angles), jnp.sin(angles)                          # (N, C/2) each


def prepare_linear_attention_params(wqk, bqk, lepe_w, lepe_b, *, H, W,
                                    num_heads, block_b=1):
    """One-time constant prep.  Call ONCE at init so the permutes / pads / table
    builds / casts never sit on the per-forward critical path.

    wqk: (C, 2C) (already x @ W layout); bqk: (2C,);
    lepe_w: (C, 1, 3, 3); lepe_b: (C,)."""
    C = wqk.shape[0]
    N = H * W
    d = C // num_heads
    Cp = ((C + 127) // 128) * 128          # lane-dense padded channel width

    # Original q/k channel j -> padded half-split lane (RoPE partner at +/- Cp/2).
    j = jnp.arange(C)
    qk_lane = j // 2 + (j % 2) * (Cp // 2)

    # Fused q|k projection weight/bias: column-permuted + zero-padded; bf16 weight.
    w_f = jnp.zeros((Cp, 2 * Cp), jnp.float32)
    w_f = w_f.at[:C, qk_lane].set(wqk[:, :C])
    w_f = w_f.at[:C, Cp + qk_lane].set(wqk[:, C:])
    w_f = w_f.astype(jnp.bfloat16)
    b_f = jnp.zeros((1, 2 * Cp), jnp.float32)
    b_f = b_f.at[0, qk_lane].set(bqk[:C]).at[0, Cp + qk_lane].set(bqk[C:])

    # RoPE tables in padded half-split layout; sign folded into sin; pad lanes
    # get (cos=1, sin=0) so they stay finite.
    cos_h, sin_h = _rope_half_tables(H, W, C)
    half_c = C // 2
    cos_t = jnp.ones((N, Cp), jnp.float32)
    cos_t = cos_t.at[:, :half_c].set(cos_h)
    cos_t = cos_t.at[:, Cp // 2:Cp // 2 + half_c].set(cos_h)
    sin_t = jnp.zeros((N, Cp), jnp.float32)
    sin_t = sin_t.at[:, :half_c].set(-sin_h)
    sin_t = sin_t.at[:, Cp // 2:Cp // 2 + half_c].set(sin_h)

    # Head masks in padded lane space: mask[p, c] = 1 iff padded q/k lane p and
    # output (v) lane c belong to the same head; pad lanes never match.
    head_qk = jnp.full((Cp,), -1, jnp.int32).at[qk_lane].set(j // d)
    head_v = jnp.full((Cp,), -2, jnp.int32).at[j].set(j // d)
    mask = head_qk[:, None] == head_v[None, :]
    mzb = mask.astype(jnp.bfloat16)                  # z-denominator matmul mask
    mkv = mask.astype(jnp.float32) * (1.0 / N)       # kv mask with 1/N folded in

    # LePE depthwise taps (9, Cp) (row = ky*3 + kx) and bias (1, Cp), zero-padded.
    lw = jnp.zeros((9, Cp), jnp.float32).at[:, :C].set(lepe_w.reshape(C, 9).T)
    lb = jnp.zeros((1, Cp), jnp.float32).at[0, :C].set(lepe_b)

    # LePE boundary-validity table, (9, N, 1): kidx = (dy+1)*3 + (dx+1).
    n_idx = jnp.arange(N)
    col = n_idx % W
    taps = []
    for dy in (-1, 0, 1):
        for dx in (-1, 0, 1):
            s_off = dy * W + dx
            taps.append((n_idx + s_off >= 0) & (n_idx + s_off < N) &
                        (col + dx >= 0) & (col + dx < W))
    valid = jnp.stack(taps, axis=0).astype(jnp.float32)[:, :, None]   # (9, N, 1)

    if block_b > 1:   # tables repeat per image inside one (block_b, N, Cp) block
        cos_t = jnp.tile(cos_t, (block_b, 1))
        sin_t = jnp.tile(sin_t, (block_b, 1))
        valid = jnp.tile(valid, (1, block_b, 1))

    return (w_f, b_f, cos_t, sin_t, mzb, mkv, lw, lb, valid)


@functools.partial(jax.jit, static_argnames=("w_img", "block_b"))
def linear_attention_apply(x, params, *, w_img, block_b=1):
    """x: (B, N, C) f32; params from prepare_linear_attention_params()."""
    w_f, b_f, cos_t, sin_t, mzb, mkv, lw, lb, valid = params
    B, N, C = x.shape
    Cp = w_f.shape[0]
    assert B % block_b == 0, "batch must be divisible by block_b"
    grid_b = B // block_b      # keep >= 2 so both v7x TensorCores stay busy
    NB = block_b * N

    if Cp != C:   # zero-pad channels so every matmul / store is 128-lane dense
        x = jnp.pad(x, ((0, 0), (0, 0), (0, Cp - C)))

    # vmem_limit derived from actual block residency (double-buffered blocks +
    # f32 intermediates headroom), clamped to fit v7x's 64 MiB physical VMEM.
    const_bytes = sum(int(a.size) * a.dtype.itemsize
                      for a in (w_f, b_f, cos_t, sin_t, mzb, mkv, lw, lb, valid))
    io_bytes = 2 * NB * Cp * 4                       # x block + out block
    vmem_limit = int(min(48 * 2 ** 20,
                         max(16 * 2 ** 20,
                             2 * (io_bytes + const_bytes) + 32 * NB * Cp * 4)))
    # TODO(synk): on v7x also mark the grid-constant operands below with
    # pipeline_mode=pl.Buffered(1) to drop their second pipeline buffer.

    kernel = functools.partial(_linear_attention_kernel, W=w_img)
    cmap2 = lambda b: (0, 0)
    out = pl.pallas_call(
        kernel,
        out_shape=jax.ShapeDtypeStruct((B, N, Cp), jnp.float32),
        grid=(grid_b,),
        in_specs=[
            pl.BlockSpec((block_b, N, Cp), lambda b: (b, 0, 0)),  # x (also v)
            pl.BlockSpec((Cp, 2 * Cp), cmap2),                    # fused q|k weight (bf16)
            pl.BlockSpec((1, 2 * Cp), cmap2),                     # fused q|k bias
            pl.BlockSpec((NB, Cp), cmap2),                        # rope cos (half-split)
            pl.BlockSpec((NB, Cp), cmap2),                        # rope signed sin
            pl.BlockSpec((Cp, Cp), cmap2),                        # head mask (bf16), z path
            pl.BlockSpec((Cp, Cp), cmap2),                        # head mask * 1/N, kv path
            pl.BlockSpec((9, Cp), cmap2),                         # lepe depthwise taps
            pl.BlockSpec((1, Cp), cmap2),                         # lepe bias
            pl.BlockSpec((9, NB, 1), lambda b: (0, 0, 0)),        # lepe validity table
        ],
        out_specs=pl.BlockSpec((block_b, N, Cp), lambda b: (b, 0, 0)),
        compiler_params=pltpu.CompilerParams(
            dimension_semantics=("parallel",),
            vmem_limit_bytes=vmem_limit),
    )(x, w_f, b_f, cos_t, sin_t, mzb, mkv, lw, lb, valid)

    return out[..., :C] if Cp != C else out


def linear_attention(x, wqk, bqk, lepe_w, lepe_b, *, H, W, num_heads, block_b=1):
    """Convenience one-shot wrapper (prefer hoisting prepare_* out of the loop)."""
    params = prepare_linear_attention_params(
        wqk, bqk, lepe_w, lepe_b, H=H, W=W, num_heads=num_heads, block_b=block_b)
    return linear_attention_apply(x, params, w_img=W, block_b=block_b)


def reference(x, wqk, bqk, lepe_w, lepe_b, cos_h, sin_h, H, W, num_heads):
    """Pure-JAX replica of the PyTorch forward (for verification)."""
    B, N, C = x.shape
    d = C // num_heads
    hi = jax.lax.Precision.HIGHEST
    qk = jnp.dot(x, wqk, precision=hi) + bqk
    q, k = qk[..., :C], qk[..., C:]
    elu = lambda t: jnp.where(t > 0, t, jnp.exp(t) - 1.0)
    q = elu(q) + 1.0
    k = elu(k) + 1.0

    def rope(t):
        t2 = t.reshape(B, N, C // 2, 2)
        re, im = t2[..., 0], t2[..., 1]
        return jnp.stack([cos_h * re - sin_h * im,
                          sin_h * re + cos_h * im], axis=-1).reshape(B, N, C)

    q_rope, k_rope = rope(q), rope(k)

    def split_heads(t):
        return t.reshape(B, N, num_heads, d).transpose(0, 2, 1, 3)

    qh, kh, vh = split_heads(q), split_heads(k), split_heads(x)
    qrh, krh = split_heads(q_rope), split_heads(k_rope)

    z = 1.0 / (jnp.einsum("bhnd,bhd->bhn", qh, kh.mean(axis=2),
                          precision=hi)[..., None] + 1e-6)
    scale = N ** -0.5
    kv = jnp.einsum("bhnd,bhne->bhde", krh * scale, vh * scale, precision=hi)
    attn = jnp.einsum("bhnd,bhde->bhne", qrh, kv, precision=hi) * z
    attn = attn.transpose(0, 2, 1, 3).reshape(B, N, C)

    v_img = x.reshape(B, H, W, C).transpose(0, 3, 1, 2)              # NCHW
    conv = jax.lax.conv_general_dilated(
        v_img, lepe_w, window_strides=(1, 1), padding=((1, 1), (1, 1)),
        feature_group_count=C, dimension_numbers=("NCHW", "OIHW", "NCHW"),
        precision=hi)
    conv = conv + lepe_b[None, :, None, None]
    conv = conv.transpose(0, 2, 3, 1).reshape(B, N, C)
    return attn + conv


if __name__ == "__main__":
    B, H, W, C, num_heads = 2, 8, 8, 64, 4
    N = H * W

    key = jax.random.PRNGKey(0)
    kx, kw, kb, kcw, kcb = jax.random.split(key, 5)
    x = jax.random.normal(kx, (B, N, C), jnp.float32)
    # nn.Linear(dim, 2*dim): weight stored already transposed as (C, 2C).
    wqk = jax.random.normal(kw, (C, 2 * C), jnp.float32) * (1.0 / math.sqrt(C))
    bqk = jax.random.normal(kb, (2 * C,), jnp.float32) * 0.02
    # nn.Conv2d(dim, dim, 3, padding=1, groups=dim): weight (C, 1, 3, 3), bias (C,)
    lepe_w = jax.random.normal(kcw, (C, 1, 3, 3), jnp.float32) * (1.0 / 3.0)
    lepe_b = jax.random.normal(kcb, (C,), jnp.float32) * 0.02

    # block_b = 1 keeps the batch grid length >= 2 (both v7x TensorCores busy);
    # raise it for larger B to amortize per-step overhead.
    block_b = 1
    params = prepare_linear_attention_params(
        wqk, bqk, lepe_w, lepe_b, H=H, W=W, num_heads=num_heads, block_b=block_b)
    out = linear_attention_apply(x, params, w_img=W, block_b=block_b)
    out = jax.block_until_ready(out)

    cos_h, sin_h = _rope_half_tables(H, W, C)
    ref = reference(x, wqk, bqk, lepe_w, lepe_b, cos_h, sin_h, H, W, num_heads)
    err = float(jnp.max(jnp.abs(out - ref)))
    assert err < 5e-2, f"max abs error too large: {err}"
    print("KERNEL_OK")
</pallas_src>

<mosaic_0001>
module attributes {stable_mosaic.version = 11 : i64} {
  func.func @_linear_attention_kernel(%arg0: i32, %arg1: memref<1x64x128xf32, #tpu.memory_space<vmem>>, %arg2: memref<128x256xbf16, #tpu.memory_space<vmem>>, %arg3: memref<1x256xf32, #tpu.memory_space<vmem>>, %arg4: memref<64x128xf32, #tpu.memory_space<vmem>>, %arg5: memref<64x128xf32, #tpu.memory_space<vmem>>, %arg6: memref<128x128xbf16, #tpu.memory_space<vmem>>, %arg7: memref<128x128xf32, #tpu.memory_space<vmem>>, %arg8: memref<9x128xf32, #tpu.memory_space<vmem>>, %arg9: memref<1x128xf32, #tpu.memory_space<vmem>>, %arg10: memref<9x64x1xf32, #tpu.memory_space<vmem>>, %arg11: memref<1x64x128xf32, #tpu.memory_space<vmem>>) attributes {dimension_semantics = [#tpu.dimension_semantics<parallel>], iteration_bounds = array<i64: 2>, scalar_prefetch = 0 : i64, scratch_operands = 0 : i64, tpu.core_type = #tpu.core_type<tc>, window_params = [{transform_indices = @transform_0, window_bounds = array<i64: 1, 64, 128>}, {pipeline_mode = #tpu.pipeline_mode<synchronous>, transform_indices = @transform_1, window_bounds = array<i64: 128, 256>}, {pipeline_mode = #tpu.pipeline_mode<synchronous>, transform_indices = @transform_2, window_bounds = array<i64: 1, 256>}, {pipeline_mode = #tpu.pipeline_mode<synchronous>, transform_indices = @transform_3, window_bounds = array<i64: 64, 128>}, {pipeline_mode = #tpu.pipeline_mode<synchronous>, transform_indices = @transform_4, window_bounds = array<i64: 64, 128>}, {pipeline_mode = #tpu.pipeline_mode<synchronous>, transform_indices = @transform_5, window_bounds = array<i64: 128, 128>}, {pipeline_mode = #tpu.pipeline_mode<synchronous>, transform_indices = @transform_6, window_bounds = array<i64: 128, 128>}, {pipeline_mode = #tpu.pipeline_mode<synchronous>, transform_indices = @transform_7, window_bounds = array<i64: 9, 128>}, {pipeline_mode = #tpu.pipeline_mode<synchronous>, transform_indices = @transform_8, window_bounds = array<i64: 1, 128>}, {pipeline_mode = #tpu.pipeline_mode<synchronous>, transform_indices = @transform_9, window_bounds = array<i64: 9, 64, 1>}, {transform_indices = @transform_10, window_bounds = array<i64: 1, 64, 128>}]} {
    %c0 = arith.constant 0 : index
    %c0_0 = arith.constant 0 : index
    %c0_1 = arith.constant 0 : index
    %0 = vector.load %arg1[%c0, %c0_0, %c0_1] : memref<1x64x128xf32, #tpu.memory_space<vmem>>, vector<1x64x128xf32>
    %1 = vector.shape_cast %0 : vector<1x64x128xf32> to vector<64x128xf32>
    %2 = arith.truncf %1 : vector<64x128xf32> to vector<64x128xbf16>
    %c0_2 = arith.constant 0 : index
    %c0_3 = arith.constant 0 : index
    %3 = vector.load %arg2[%c0_2, %c0_3] : memref<128x256xbf16, #tpu.memory_space<vmem>>, vector<128x256xbf16>
    %cst = arith.constant dense<0.000000e+00> : vector<64x256xf32>
    %4 = tpu.matmul %2, %3, %cst {dimension_numbers = #tpu.dot_dimension_numbers<[1], [0], [0], [1], [0, 0, 1, 1], [], []>} : vector<64x128xbf16>, vector<128x256xbf16>, vector<64x256xf32> -> vector<64x256xf32>
    %c0_4 = arith.constant 0 : index
    %c0_5 = arith.constant 0 : index
    %5 = vector.load %arg3[%c0_4, %c0_5] : memref<1x256xf32, #tpu.memory_space<vmem>>, vector<1x256xf32>
    %6 = vector.broadcast %5 : vector<1x256xf32> to vector<64x256xf32>
    %7 = arith.addf %4, %6 : vector<64x256xf32>
    %cst_6 = arith.constant 0.000000e+00 : f32
    %8 = vector.broadcast %cst_6 : f32 to vector<64x256xf32>
    %9 = arith.cmpf ogt, %7, %8 : vector<64x256xf32>
    %cst_7 = arith.constant 0.000000e+00 : f32
    %10 = vector.broadcast %cst_7 : f32 to vector<64x256xf32>
    %11 = arith.minimumf %7, %10 : vector<64x256xf32>
    %12 = math.exp %11 : vector<64x256xf32>
    %cst_8 = arith.constant 1.000000e+00 : f32
    %13 = vector.broadcast %cst_8 : f32 to vector<64x256xf32>
    %14 = arith.subf %12, %13 : vector<64x256xf32>
    %15 = arith.select %9, %7, %14 : vector<64x256xi1>, vector<64x256xf32>
    %cst_9 = arith.constant 1.000000e+00 : f32
    %16 = vector.broadcast %cst_9 : f32 to vector<64x256xf32>
    %17 = arith.addf %15, %16 : vector<64x256xf32>
    %18 = vector.extract_strided_slice %17 {offsets = [0, 0], sizes = [64, 128], strides = [1, 1]} : vector<64x256xf32> to vector<64x128xf32>
    %19 = vector.extract_strided_slice %17 {offsets = [0, 128], sizes = [64, 128], strides = [1, 1]} : vector<64x256xf32> to vector<64x128xf32>
    %c0_10 = arith.constant 0 : index
    %c0_11 = arith.constant 0 : index
    %20 = vector.load %arg4[%c0_10, %c0_11] : memref<64x128xf32, #tpu.memory_space<vmem>>, vector<64x128xf32>
    %c0_12 = arith.constant 0 : index
    %c0_13 = arith.constant 0 : index
    %21 = vector.load %arg5[%c0_12, %c0_13] : memref<64x128xf32, #tpu.memory_space<vmem>>, vector<64x128xf32>
    %22 = arith.mulf %18, %20 : vector<64x128xf32>
    %c64_i32 = arith.constant 64 : i32
    %23 = tpu.dynamic_rotate %18 by %c64_i32 dim 1 : vector<64x128xf32>, i32 -> vector<64x128xf32>
    %24 = arith.mulf %23, %21 : vector<64x128xf32>
    %25 = arith.addf %22, %24 : vector<64x128xf32>
    %26 = arith.truncf %25 : vector<64x128xf32> to vector<64x128xbf16>
    %27 = arith.mulf %19, %20 : vector<64x128xf32>
    %c64_i32_14 = arith.constant 64 : i32
    %28 = tpu.dynamic_rotate %19 by %c64_i32_14 dim 1 : vector<64x128xf32>, i32 -> vector<64x128xf32>
    %29 = arith.mulf %28, %21 : vector<64x128xf32>
    %30 = arith.addf %27, %29 : vector<64x128xf32>
    %31 = arith.truncf %30 : vector<64x128xf32> to vector<64x128xbf16>
    %cst_15 = arith.constant 0.000000e+00 : f32
    %32 = vector.broadcast %cst_15 : f32 to vector<64x128xf32>
    %c0_16 = arith.constant 0 : index
    %c0_17 = arith.constant 0 : index
    %33 = vector.load %arg8[%c0_16, %c0_17] : memref<9x128xf32, #tpu.memory_space<vmem>>, vector<1x128xf32>
    %c0_18 = arith.constant 0 : index
    %c0_19 = arith.constant 0 : index
    %c0_20 = arith.constant 0 : index
    %34 = vector.load %arg10[%c0_18, %c0_19, %c0_20] : memref<9x64x1xf32, #tpu.memory_space<vmem>>, vector<1x64x1xf32>
    %35 = vector.shape_cast %34 : vector<1x64x1xf32> to vector<64x1xf32>
    %c9_i32 = arith.constant 9 : i32
    %36 = tpu.dynamic_rotate %1 by %c9_i32 dim 0 : vector<64x128xf32>, i32 -> vector<64x128xf32>
    %37 = vector.broadcast %33 : vector<1x128xf32> to vector<64x128xf32>
    %38 = vector.broadcast %35 : vector<64x1xf32> to vector<64x128xf32>
    %39 = arith.mulf %37, %38 : vector<64x128xf32>
    %40 = arith.mulf %36, %39 : vector<64x128xf32>
    %41 = arith.addf %32, %40 : vector<64x128xf32>
    %c1 = arith.constant 1 : index
    %c0_21 = arith.constant 0 : index
    %42 = vector.load %arg8[%c1, %c0_21] : memref<9x128xf32, #tpu.memory_space<vmem>>, vector<1x128xf32>
    %c1_22 = arith.constant 1 : index
    %c0_23 = arith.constant 0 : index
    %c0_24 = arith.constant 0 : index
    %43 = vector.load %arg10[%c1_22, %c0_23, %c0_24] : memref<9x64x1xf32, #tpu.memory_space<vmem>>, vector<1x64x1xf32>
    %44 = vector.shape_cast %43 : vector<1x64x1xf32> to vector<64x1xf32>
    %c8_i32 = arith.constant 8 : i32
    %45 = tpu.dynamic_rotate %1 by %c8_i32 dim 0 : vector<64x128xf32>, i32 -> vector<64x128xf32>
    %46 = vector.broadcast %42 : vector<1x128xf32> to vector<64x128xf32>
    %47 = vector.broadcast %44 : vector<64x1xf32> to vector<64x128xf32>
    %48 = arith.mulf %46, %47 : vector<64x128xf32>
    %49 = arith.mulf %45, %48 : vector<64x128xf32>
    %50 = arith.addf %41, %49 : vector<64x128xf32>
    %c2 = arith.constant 2 : index
    %c0_25 = arith.constant 0 : index
    %51 = vector.load %arg8[%c2, %c0_25] : memref<9x128xf32, #tpu.memory_space<vmem>>, vector<1x128xf32>
    %c2_26 = arith.constant 2 : index
    %c0_27 = arith.constant 0 : index
    %c0_28 = arith.constant 0 : index
    %52 = vector.load %arg10[%c2_26, %c0_27, %c0_28] : memref<9x64x1xf32, #tpu.memory_space<vmem>>, vector<1x64x1xf32>
    %53 = vector.shape_cast %52 : vector<1x64x1xf32> to vector<64x1xf32>
    %c7_i32 = arith.constant 7 : i32
    %54 = tpu.dynamic_rotate %1 by %c7_i32 dim 0 : vector<64x128xf32>, i32 -> vector<64x128xf32>
    %55 = vector.broadcast %51 : vector<1x128xf32> to vector<64x128xf32>
    %56 = vector.broadcast %53 : vector<64x1xf32> to vector<64x128xf32>
    %57 = arith.mulf %55, %56 : vector<64x128xf32>
    %58 = arith.mulf %54, %57 : vector<64x128xf32>
    %59 = arith.addf %50, %58 : vector<64x128xf32>
    %c3 = arith.constant 3 : index
    %c0_29 = arith.constant 0 : index
    %60 = vector.load %arg8[%c3, %c0_29] : memref<9x128xf32, #tpu.memory_space<vmem>>, vector<1x128xf32>
    %c3_30 = arith.constant 3 : index
    %c0_31 = arith.constant 0 : index
    %c0_32 = arith.constant 0 : index
    %61 = vector.load %arg10[%c3_30, %c0_31, %c0_32] : memref<9x64x1xf32, #tpu.memory_space<vmem>>, vector<1x64x1xf32>
    %62 = vector.shape_cast %61 : vector<1x64x1xf32> to vector<64x1xf32>
    %c1_i32 = arith.constant 1 : i32
    %63 = tpu.dynamic_rotate %1 by %c1_i32 dim 0 : vector<64x128xf32>, i32 -> vector<64x128xf32>
    %64 = vector.broadcast %60 : vector<1x128xf32> to vector<64x128xf32>
    %65 = vector.broadcast %62 : vector<64x1xf32> to vector<64x128xf32>
    %66 = arith.mulf %64, %65 : vector<64x128xf32>
    %67 = arith.mulf %63, %66 : vector<64x128xf32>
    %68 = arith.addf %59, %67 : vector<64x128xf32>
    %c4 = arith.constant 4 : index
    %c0_33 = arith.constant 0 : index
    %69 = vector.load %arg8[%c4, %c0_33] : memref<9x128xf32, #tpu.memory_space<vmem>>, vector<1x128xf32>
    %c4_34 = arith.constant 4 : index
    %c0_35 = arith.constant 0 : index
    %c0_36 = arith.constant 0 : index
    %70 = vector.load %arg10[%c4_34, %c0_35, %c0_36] : memref<9x64x1xf32, #tpu.memory_space<vmem>>, vector<1x64x1xf32>
    %71 = vector.shape_cast %70 : vector<1x64x1xf32> to vector<64x1xf32>
    %72 = vector.broadcast %69 : vector<1x128xf32> to vector<64x128xf32>
    %73 = vector.broadcast %71 : vector<64x1xf32> to vector<64x128xf32>
    %74 = arith.mulf %72, %73 : vector<64x128xf32>
    %75 = arith.mulf %1, %74 : vector<64x128xf32>
    %76 = arith.addf %68, %75 : vector<64x128xf32>
    %c5 = arith.constant 5 : index
    %c0_37 = arith.constant 0 : index
    %77 = vector.load %arg8[%c5, %c0_37] : memref<9x128xf32, #tpu.memory_space<vmem>>, vector<1x128xf32>
    %c5_38 = arith.constant 5 : index
    %c0_39 = arith.constant 0 : index
    %c0_40 = arith.constant 0 : index
    %78 = vector.load %arg10[%c5_38, %c0_39, %c0_40] : memref<9x64x1xf32, #tpu.memory_space<vmem>>, vector<1x64x1xf32>
    %79 = vector.shape_cast %78 : vector<1x64x1xf32> to vector<64x1xf32>
    %c63_i32 = arith.constant 63 : i32
    %80 = tpu.dynamic_rotate %1 by %c63_i32 dim 0 : vector<64x128xf32>, i32 -> vector<64x128xf32>
    %81 = vector.broadcast %77 : vector<1x128xf32> to vector<64x128xf32>
    %82 = vector.broadcast %79 : vector<64x1xf32> to vector<64x128xf32>
    %83 = arith.mulf %81, %82 : vector<64x128xf32>
    %84 = arith.mulf %80, %83 : vector<64x128xf32>
    %85 = arith.addf %76, %84 : vector<64x128xf32>
    %c6 = arith.constant 6 : index
    %c0_41 = arith.constant 0 : index
    %86 = vector.load %arg8[%c6, %c0_41] : memref<9x128xf32, #tpu.memory_space<vmem>>, vector<1x128xf32>
    %c6_42 = arith.constant 6 : index
    %c0_43 = arith.constant 0 : index
    %c0_44 = arith.constant 0 : index
    %87 = vector.load %arg10[%c6_42, %c0_43, %c0_44] : memref<9x64x1xf32, #tpu.memory_space<vmem>>, vector<1x64x1xf32>
    %88 = vector.shape_cast %87 : vector<1x64x1xf32> to vector<64x1xf32>
    %c57_i32 = arith.constant 57 : i32
    %89 = tpu.dynamic_rotate %1 by %c57_i32 dim 0 : vector<64x128xf32>, i32 -> vector<64x128xf32>
    %90 = vector.broadcast %86 : vector<1x128xf32> to vector<64x128xf32>
    %91 = vector.broadcast %88 : vector<64x1xf32> to vector<64x128xf32>
    %92 = arith.mulf %90, %91 : vector<64x128xf32>
    %93 = arith.mulf %89, %92 : vector<64x128xf32>
    %94 = arith.addf %85, %93 : vector<64x128xf32>
    %c7 = arith.constant 7 : index
    %c0_45 = arith.constant 0 : index
    %95 = vector.load %arg8[%c7, %c0_45] : memref<9x128xf32, #tpu.memory_space<vmem>>, vector<1x128xf32>
    %c7_46 = arith.constant 7 : index
    %c0_47 = arith.constant 0 : index
    %c0_48 = arith.constant 0 : index
    %96 = vector.load %arg10[%c7_46, %c0_47, %c0_48] : memref<9x64x1xf32, #tpu.memory_space<vmem>>, vector<1x64x1xf32>
    %97 = vector.shape_cast %96 : vector<1x64x1xf32> to vector<64x1xf32>
    %c56_i32 = arith.constant 56 : i32
    %98 = tpu.dynamic_rotate %1 by %c56_i32 dim 0 : vector<64x128xf32>, i32 -> vector<64x128xf32>
    %99 = vector.broadcast %95 : vector<1x128xf32> to vector<64x128xf32>
    %100 = vector.broadcast %97 : vector<64x1xf32> to vector<64x128xf32>
    %101 = arith.mulf %99, %100 : vector<64x128xf32>
    %102 = arith.mulf %98, %101 : vector<64x128xf32>
    %103 = arith.addf %94, %102 : vector<64x128xf32>
    %c8 = arith.constant 8 : index
    %c0_49 = arith.constant 0 : index
    %104 = vector.load %arg8[%c8, %c0_49] : memref<9x128xf32, #tpu.memory_space<vmem>>, vector<1x128xf32>
    %c8_50 = arith.constant 8 : index
    %c0_51 = arith.constant 0 : index
    %c0_52 = arith.constant 0 : index
    %105 = vector.load %arg10[%c8_50, %c0_51, %c0_52] : memref<9x64x1xf32, #tpu.memory_space<vmem>>, vector<1x64x1xf32>
    %106 = vector.shape_cast %105 : vector<1x64x1xf32> to vector<64x1xf32>
    %c55_i32 = arith.constant 55 : i32
    %107 = tpu.dynamic_rotate %1 by %c55_i32 dim 0 : vector<64x128xf32>, i32 -> vector<64x128xf32>
    %108 = vector.broadcast %104 : vector<1x128xf32> to vector<64x128xf32>
    %109 = vector.broadcast %106 : vector<64x1xf32> to vector<64x128xf32>
    %110 = arith.mulf %108, %109 : vector<64x128xf32>
    %111 = arith.mulf %107, %110 : vector<64x128xf32>
    %112 = arith.addf %103, %111 : vector<64x128xf32>
    %cst_53 = arith.constant dense<0.000000e+00> : vector<128xf32>
    %113 = vector.multi_reduction <add>, %19, %cst_53 [0] : vector<64x128xf32> to vector<128xf32>
    %114 = vector.shape_cast %113 : vector<128xf32> to vector<1x128xf32>
    %cst_54 = arith.constant 6.400000e+01 : f32
    %115 = vector.broadcast %cst_54 : f32 to vector<1x128xf32>
    %116 = arith.divf %114, %115 : vector<1x128xf32>
    %117 = vector.broadcast %116 : vector<1x128xf32> to vector<64x128xf32>
    %118 = arith.mulf %18, %117 : vector<64x128xf32>
    %119 = arith.truncf %118 : vector<64x128xf32> to vector<64x128xbf16>
    %c0_55 = arith.constant 0 : index
    %c0_56 = arith.constant 0 : index
    %120 = vector.load %arg6[%c0_55, %c0_56] : memref<128x128xbf16, #tpu.memory_space<vmem>>, vector<128x128xbf16>
    %cst_57 = arith.constant dense<0.000000e+00> : vector<64x128xf32>
    %121 = tpu.matmul %119, %120, %cst_57 {dimension_numbers = #tpu.dot_dimension_numbers<[1], [0], [0], [1], [0, 0, 1, 1], [], []>} : vector<64x128xbf16>, vector<128x128xbf16>, vector<64x128xf32> -> vector<64x128xf32>
    %cst_58 = arith.constant dense<0.000000e+00> : vector<128x128xf32>
    %122 = tpu.matmul %31, %2, %cst_58 {dimension_numbers = #tpu.dot_dimension_numbers<[0], [0], [1], [1], [0, 1, 1, 1], [], []>} : vector<64x128xbf16>, vector<64x128xbf16>, vector<128x128xf32> -> vector<128x128xf32>
    %c0_59 = arith.constant 0 : index
    %c0_60 = arith.constant 0 : index
    %123 = vector.load %arg7[%c0_59, %c0_60] : memref<128x128xf32, #tpu.memory_space<vmem>>, vector<128x128xf32>
    %124 = arith.mulf %122, %123 : vector<128x128xf32>
    %125 = arith.truncf %124 : vector<128x128xf32> to vector<128x128xbf16>
    %cst_61 = arith.constant dense<0.000000e+00> : vector<64x128xf32>
    %126 = tpu.matmul %26, %125, %cst_61 {dimension_numbers = #tpu.dot_dimension_numbers<[1], [0], [0], [1], [0, 0, 1, 1], [], []>} : vector<64x128xbf16>, vector<128x128xbf16>, vector<64x128xf32> -> vector<64x128xf32>
    %cst_62 = arith.constant 9.99999997E-7 : f32
    %127 = vector.broadcast %cst_62 : f32 to vector<64x128xf32>
    %128 = arith.addf %121, %127 : vector<64x128xf32>
    %129 = tpu.reciprocal %128 {approx = true} : vector<64x128xf32> -> vector<64x128xf32>
    %130 = arith.mulf %126, %129 : vector<64x128xf32>
    %131 = arith.addf %130, %112 : vector<64x128xf32>
    %c0_63 = arith.constant 0 : index
    %c0_64 = arith.constant 0 : index
    %132 = vector.load %arg9[%c0_63, %c0_64] : memref<1x128xf32, #tpu.memory_space<vmem>>, vector<1x128xf32>
    %133 = vector.broadcast %132 : vector<1x128xf32> to vector<64x128xf32>
    %134 = arith.addf %131, %133 : vector<64x128xf32>
    %c0_65 = arith.constant 0 : index
    %c0_66 = arith.constant 0 : index
    %c0_67 = arith.constant 0 : index
    %135 = vector.load %arg11[%c0_65, %c0_66, %c0_67] : memref<1x64x128xf32, #tpu.memory_space<vmem>>, vector<1x64x128xf32>
    %136 = vector.shape_cast %135 : vector<1x64x128xf32> to vector<64x128xf32>
    %137 = vector.shape_cast %134 : vector<64x128xf32> to vector<1x64x128xf32>
    tpu.vector_store %arg11[%c0_65, %c0_66, %c0_67], %137 {strides = array<i32>} : memref<1x64x128xf32, #tpu.memory_space<vmem>>, vector<1x64x128xf32>,
    return
  }
  func.func @transform_0(%arg0: i32) -> (i32, i32, i32) {
    %c0_i32 = arith.constant 0 : i32
    %c0_i32_0 = arith.constant 0 : i32
    %c0_i32_1 = arith.constant 0 : i32
    return %arg0, %c0_i32, %c0_i32_0 : i32, i32, i32
  }
  func.func @transform_1(%arg0: i32) -> (i32, i32) {
    %c0_i32 = arith.constant 0 : i32
    %c0_i32_0 = arith.constant 0 : i32
    %c0_i32_1 = arith.constant 0 : i32
    return %c0_i32, %c0_i32_0 : i32, i32
  }
  func.func @transform_2(%arg0: i32) -> (i32, i32) {
    %c0_i32 = arith.constant 0 : i32
    %c0_i32_0 = arith.constant 0 : i32
    %c0_i32_1 = arith.constant 0 : i32
    return %c0_i32, %c0_i32_0 : i32, i32
  }
  func.func @transform_3(%arg0: i32) -> (i32, i32) {
    %c0_i32 = arith.constant 0 : i32
    %c0_i32_0 = arith.constant 0 : i32
    %c0_i32_1 = arith.constant 0 : i32
    return %c0_i32, %c0_i32_0 : i32, i32
  }
  func.func @transform_4(%arg0: i32) -> (i32, i32) {
    %c0_i32 = arith.constant 0 : i32
    %c0_i32_0 = arith.constant 0 : i32
    %c0_i32_1 = arith.constant 0 : i32
    return %c0_i32, %c0_i32_0 : i32, i32
  }
  func.func @transform_5(%arg0: i32) -> (i32, i32) {
    %c0_i32 = arith.constant 0 : i32
    %c0_i32_0 = arith.constant 0 : i32
    %c0_i32_1 = arith.constant 0 : i32
    return %c0_i32, %c0_i32_0 : i32, i32
  }
  func.func @transform_6(%arg0: i32) -> (i32, i32) {
    %c0_i32 = arith.constant 0 : i32
    %c0_i32_0 = arith.constant 0 : i32
    %c0_i32_1 = arith.constant 0 : i32
    return %c0_i32, %c0_i32_0 : i32, i32
  }
  func.func @transform_7(%arg0: i32) -> (i32, i32) {
    %c0_i32 = arith.constant 0 : i32
    %c0_i32_0 = arith.constant 0 : i32
    %c0_i32_1 = arith.constant 0 : i32
    return %c0_i32, %c0_i32_0 : i32, i32
  }
  func.func @transform_8(%arg0: i32) -> (i32, i32) {
    %c0_i32 = arith.constant 0 : i32
    %c0_i32_0 = arith.constant 0 : i32
    %c0_i32_1 = arith.constant 0 : i32
    return %c0_i32, %c0_i32_0 : i32, i32
  }
  func.func @transform_9(%arg0: i32) -> (i32, i32, i32) {
    %c0_i32 = arith.constant 0 : i32
    %c0_i32_0 = arith.constant 0 : i32
    %c0_i32_1 = arith.constant 0 : i32
    %c0_i32_2 = arith.constant 0 : i32
    return %c0_i32, %c0_i32_0, %c0_i32_1 : i32, i32, i32
  }
  func.func @transform_10(%arg0: i32) -> (i32, i32, i32) {
    %c0_i32 = arith.constant 0 : i32
    %c0_i32_0 = arith.constant 0 : i32
    %c0_i32_1 = arith.constant 0 : i32
    return %arg0, %c0_i32, %c0_i32_0 : i32, i32, i32
  }
}

</mosaic_0001>

<llo_original>
// kernel: linear_attention_apply.1
$region0: #{linear_attention_apply.1}
  #allocation0 [shape = 'u32[]', space=smem, size = 0x4, offset = 0x4, fixed_abs, tag = 'smem constant byte address 0x4 - core index']
  #allocation1 [shape = 'u32[72,128]{1,0:T(1,128)}', space=vmem, size = 0x9000, scoped, tag = 'internal scratch']
  %s0 = inlined_call_operand.vmem [shape: f32[2,64,128], index: 0, kind: input, shape index: {}]
  %s1 = inlined_call_operand.vmem [shape: bf16[128,256], index: 1, kind: input, shape index: {}]
  %s2 = inlined_call_operand.vmem [shape: f32[1,256], index: 2, kind: input, shape index: {}]
  %s3 = inlined_call_operand.vmem [shape: f32[64,128], index: 3, kind: input, shape index: {}]
  %s4 = inlined_call_operand.vmem [shape: f32[64,128], index: 4, kind: input, shape index: {}]
  %s5 = inlined_call_operand.vmem [shape: bf16[128,128], index: 5, kind: input, shape index: {}]
  %s6 = inlined_call_operand.vmem [shape: f32[128,128], index: 6, kind: input, shape index: {}]
  %s7 = inlined_call_operand.vmem [shape: f32[9,128], index: 7, kind: input, shape index: {}]
  %s8 = inlined_call_operand.vmem [shape: f32[1,128], index: 8, kind: input, shape index: {}]
  %s9 = inlined_call_operand.vmem [shape: f32[9,64,1], index: 9, kind: input, shape index: {}]
  %s10 = inlined_call_operand.hbm [shape: f32[2,64,128], index: 10, kind: output, shape index: {}]
  %s11 = sld [smem:[#allocation0]]
  $region73: #{linear_attention_apply.1} parent=0
    _
  %s13 = ssub.s32 1, %s11
  %s14 = scalar_select 0, %s13, %s11
  $region1: #{linear_attention_apply.1} parent=0
    #allocation2 [shape = 'u8[65536]{0}', space=vmem, size = 0x10000, scoped, tag = 'output window, operand 0']
    #allocation3 [shape = 's32[2]{0}', space=sflag, size = 0x8, scoped, tag = 'scoped memory for linear_attention_apply.1']
    %15 = vsyncpa [#allocation3], 0
    %s16 = scalar_lea.sflag [#allocation3], 1
    %17 = vsyncpa %s16, 0
    loop: start=0, step=1, limit=4
    $region2: #{linear_attention_apply.1} parent=1 // loop_pre_header
      _
    $region3: #{linear_attention_apply.1} parent=1 // loop_header
      %s19 = sphi 0, %s23
      %p20 = scmp.ge.s32.totalorder %s19, 4
      %s29 = sphi 0, %s31
      %s32 = sphi 0, %s29
      %s33 = sphi 0, %s32
      %s49 = sphi 0, %s33
      %s53 = sphi 0, %s53
      %s55 = sphi 0, %s53
      %s56 = sphi 0, %s55
      %s70 = sphi 0, %s56
      %s74 = sphi 0, %s74
      %s76 = sphi 0, %s74
      %s77 = sphi 0, %s76
      %s91 = sphi 0, %s77
      %s95 = sphi 0, %s95
      %s97 = sphi 0, %s95
      %s98 = sphi 0, %s97
      %s112 = sphi 0, %s98
      %s116 = sphi 0, %s116
      %s118 = sphi 0, %s116
      %s119 = sphi 0, %s118
      %s133 = sphi 0, %s119
      %s137 = sphi 0, %s137
      %s139 = sphi 0, %s137
      %s140 = sphi 0, %s139
      %s154 = sphi 0, %s140
      %s158 = sphi 0, %s158
      %s160 = sphi 0, %s158
      %s161 = sphi 0, %s160
      %s175 = sphi 0, %s161
      %s179 = sphi 0, %s179
      %s181 = sphi 0, %s179
      %s182 = sphi 0, %s181
      %s196 = sphi 0, %s182
      %s200 = sphi 0, %s200
      %s202 = sphi 0, %s200
      %s203 = sphi 0, %s202
      %s217 = sphi 0, %s203
      %s221 = sphi 0, %s221
      %s223 = sphi 0, %s221
      %s224 = sphi 0, %s223
      %s238 = sphi 0, %s224
      %s244 = sphi 0, %s246
      %s247 = sphi 0, %s244
      %s248 = sphi 0, %s247
      %s264 = sphi 0, %s248
    $region4: #{linear_attention_apply.1} parent=1 // loop_header_branch
      %22 = sbr.rel (%p20) target = $region8
    $region5: #{linear_attention_apply.1} parent=1 // loop_body
      %s24 = ssub.s32 %s19, 1
      %s25 = ssub.s32 %s19, 2
      %s26 = sadd.s32 %s19, 1
      %s27 = ssub.s32 %s19, %s26
      %p28 = scmp.eq.s32.totalorder %s27, 0
      %s30 = sadd.s32 %s29, 1
      %s31 = scalar_select %p28, %s29, %s30
      %p34 = pneg %p28
      %p35 = scmp.eq.s32.totalorder %s19, 1
      %p36 = por %p34, %p35
      %p37 = scmp.ne.s32.totalorder %s29, %s32
      %p38 = scmp.eq.s32.totalorder %s19, 0
      %p39 = por %p37, %p38
      %p40 = scmp.ne.s32.totalorder %s29, %s32
      %p41 = scmp.eq.s32.totalorder %s24, 1
      %p42 = por %p40, %p41
      %p43 = scmp.ne.s32.totalorder %s32, %s33
      %p44 = scmp.eq.s32.totalorder %s24, 0
      %p45 = por %p43, %p44
      %p46 = scmp.ne.s32.totalorder %s32, %s33
      %p47 = scmp.eq.s32.totalorder %s25, 1
      %p48 = por %p46, %p47
      %p50 = scmp.ne.s32.totalorder %s33, %s49
      %p51 = scmp.eq.s32.totalorder %s25, 0
      %p52 = por %p50, %p51
      %s54 = sadd.s32 %s53, 1
      %p57 = scmp.eq.s32.totalorder %s19, 1
      %p58 = scmp.ne.s32.totalorder %s53, %s55
      %p59 = scmp.eq.s32.totalorder %s19, 0
      %p60 = por %p58, %p59
      %p61 = scmp.ne.s32.totalorder %s53, %s55
      %p62 = scmp.eq.s32.totalorder %s24, 1
      %p63 = por %p61, %p62
      %p64 = scmp.ne.s32.totalorder %s55, %s56
      %p65 = scmp.eq.s32.totalorder %s24, 0
      %p66 = por %p64, %p65
      %p67 = scmp.ne.s32.totalorder %s55, %s56
      %p68 = scmp.eq.s32.totalorder %s25, 1
      %p69 = por %p67, %p68
      %p71 = scmp.ne.s32.totalorder %s56, %s70
      %p72 = scmp.eq.s32.totalorder %s25, 0
      %p73 = por %p71, %p72
      %s75 = sadd.s32 %s74, 1
      %p78 = scmp.eq.s32.totalorder %s19, 1
      %p79 = scmp.ne.s32.totalorder %s74, %s76
      %p80 = scmp.eq.s32.totalorder %s19, 0
      %p81 = por %p79, %p80
      %p82 = scmp.ne.s32.totalorder %s74, %s76
      %p83 = scmp.eq.s32.totalorder %s24, 1
      %p84 = por %p82, %p83
      %p85 = scmp.ne.s32.totalorder %s76, %s77
      %p86 = scmp.eq.s32.totalorder %s24, 0
      %p87 = por %p85, %p86
      %p88 = scmp.ne.s32.totalorder %s76, %s77
      %p89 = scmp.eq.s32.totalorder %s25, 1
      %p90 = por %p88, %p89
      %p92 = scmp.ne.s32.totalorder %s77, %s91
      %p93 = scmp.eq.s32.totalorder %s25, 0
      %p94 = por %p92, %p93
      %s96 = sadd.s32 %s95, 1
      %p99 = scmp.eq.s32.totalorder %s19, 1
      %p100 = scmp.ne.s32.totalorder %s95, %s97
      %p101 = scmp.eq.s32.totalorder %s19, 0
      %p102 = por %p100, %p101
      %p103 = scmp.ne.s32.totalorder %s95, %s97
      %p104 = scmp.eq.s32.totalorder %s24, 1
      %p105 = por %p103, %p104
      %p106 = scmp.ne.s32.totalorder %s97, %s98
      %p107 = scmp.eq.s32.totalorder %s24, 0
      %p108 = por %p106, %p107
      %p109 = scmp.ne.s32.totalorder %s97, %s98
      %p110 = scmp.eq.s32.totalorder %s25, 1
      %p111 = por %p109, %p110
      %p113 = scmp.ne.s32.totalorder %s98, %s112
      %p114 = scmp.eq.s32.totalorder %s25, 0
      %p115 = por %p113, %p114
      %s117 = sadd.s32 %s116, 1
      %p120 = scmp.eq.s32.totalorder %s19, 1
      %p121 = scmp.ne.s32.totalorder %s116, %s118
      %p122 = scmp.eq.s32.totalorder %s19, 0
      %p123 = por %p121, %p122
      %p124 = scmp.ne.s32.totalorder %s116, %s118
      %p125 = scmp.eq.s32.totalorder %s24, 1
      %p126 = por %p124, %p125
      %p127 = scmp.ne.s32.totalorder %s118, %s119
      %p128 = scmp.eq.s32.totalorder %s24, 0
      %p129 = por %p127, %p128
      %p130 = scmp.ne.s32.totalorder %s118, %s119
      %p131 = scmp.eq.s32.totalorder %s25, 1
      %p132 = por %p130, %p131
      %p134 = scmp.ne.s32.totalorder %s119, %s133
      %p135 = scmp.eq.s32.totalorder %s25, 0
      %p136 = por %p134, %p135
      %s138 = sadd.s32 %s137, 1
      %p141 = scmp.eq.s32.totalorder %s19, 1
      %p142 = scmp.ne.s32.totalorder %s137, %s139
      %p143 = scmp.eq.s32.totalorder %s19, 0
      %p144 = por %p142, %p143
      %p145 = scmp.ne.s32.totalorder %s137, %s139
      %p146 = scmp.eq.s32.totalorder %s24, 1
      %p147 = por %p145, %p146
      %p148 = scmp.ne.s32.totalorder %s139, %s140
      %p149 = scmp.eq.s32.totalorder %s24, 0
      %p150 = por %p148, %p149
      %p151 = scmp.ne.s32.totalorder %s139, %s140
      %p152 = scmp.eq.s32.totalorder %s25, 1
      %p153 = por %p151, %p152
      %p155 = scmp.ne.s32.totalorder %s140, %s154
      %p156 = scmp.eq.s32.totalorder %s25, 0
      %p157 = por %p155, %p156
      %s159 = sadd.s32 %s158, 1
      %p162 = scmp.eq.s32.totalorder %s19, 1
      %p163 = scmp.ne.s32.totalorder %s158, %s160
      %p164 = scmp.eq.s32.totalorder %s19, 0
      %p165 = por %p163, %p164
      %p166 = scmp.ne.s32.totalorder %s158, %s160
      %p167 = scmp.eq.s32.totalorder %s24, 1
      %p168 = por %p166, %p167
      %p169 = scmp.ne.s32.totalorder %s160, %s161
      %p170 = scmp.eq.s32.totalorder %s24, 0
      %p171 = por %p169, %p170
      %p172 = scmp.ne.s32.totalorder %s160, %s161
      %p173 = scmp.eq.s32.totalorder %s25, 1
      %p174 = por %p172, %p173
      %p176 = scmp.ne.s32.totalorder %s161, %s175
      %p177 = scmp.eq.s32.totalorder %s25, 0
      %p178 = por %p176, %p177
      %s180 = sadd.s32 %s179, 1
      %p183 = scmp.eq.s32.totalorder %s19, 1
      %p184 = scmp.ne.s32.totalorder %s179, %s181
      %p185 = scmp.eq.s32.totalorder %s19, 0
      %p186 = por %p184, %p185
      %p187 = scmp.ne.s32.totalorder %s179, %s181
      %p188 = scmp.eq.s32.totalorder %s24, 1
      %p189 = por %p187, %p188
      %p190 = scmp.ne.s32.totalorder %s181, %s182
      %p191 = scmp.eq.s32.totalorder %s24, 0
      %p192 = por %p190, %p191
      %p193 = scmp.ne.s32.totalorder %s181, %s182
      %p194 = scmp.eq.s32.totalorder %s25, 1
      %p195 = por %p193, %p194
      %p197 = scmp.ne.s32.totalorder %s182, %s196
      %p198 = scmp.eq.s32.totalorder %s25, 0
      %p199 = por %p197, %p198
      %s201 = sadd.s32 %s200, 1
      %p204 = scmp.eq.s32.totalorder %s19, 1
      %p205 = scmp.ne.s32.totalorder %s200, %s202
      %p206 = scmp.eq.s32.totalorder %s19, 0
      %p207 = por %p205, %p206
      %p208 = scmp.ne.s32.totalorder %s200, %s202
      %p209 = scmp.eq.s32.totalorder %s24, 1
      %p210 = por %p208, %p209
      %p211 = scmp.ne.s32.totalorder %s202, %s203
      %p212 = scmp.eq.s32.totalorder %s24, 0
      %p213 = por %p211, %p212
      %p214 = scmp.ne.s32.totalorder %s202, %s203
      %p215 = scmp.eq.s32.totalorder %s25, 1
      %p216 = por %p214, %p215
      %p218 = scmp.ne.s32.totalorder %s203, %s217
      %p219 = scmp.eq.s32.totalorder %s25, 0
      %p220 = por %p218, %p219
      %s222 = sadd.s32 %s221, 1
      %p225 = scmp.eq.s32.totalorder %s19, 1
      %p226 = scmp.ne.s32.totalorder %s221, %s223
      %p227 = scmp.eq.s32.totalorder %s19, 0
      %p228 = por %p226, %p227
      %p229 = scmp.ne.s32.totalorder %s221, %s223
      %p230 = scmp.eq.s32.totalorder %s24, 1
      %p231 = por %p229, %p230
      %p232 = scmp.ne.s32.totalorder %s223, %s224
      %p233 = scmp.eq.s32.totalorder %s24, 0
      %p234 = por %p232, %p233
      %p235 = scmp.ne.s32.totalorder %s223, %s224
      %p236 = scmp.eq.s32.totalorder %s25, 1
      %p237 = por %p235, %p236
      %p239 = scmp.ne.s32.totalorder %s224, %s238
      %p240 = scmp.eq.s32.totalorder %s25, 0
      %p241 = por %p239, %p240
      %s242 = ssub.s32 %s19, %s26
      %p243 = scmp.eq.s32.totalorder %s242, 0
      %s245 = sadd.s32 %s244, 1
      %s246 = scalar_select %p243, %s244, %s245
      %p249 = pneg %p243
      %p250 = scmp.eq.s32.totalorder %s19, 1
      %p251 = por %p249, %p250
      %p252 = scmp.ne.s32.totalorder %s244, %s247
      %p253 = scmp.eq.s32.totalorder %s19, 0
      %p254 = por %p252, %p253
      %p255 = scmp.ne.s32.totalorder %s244, %s247
      %p256 = scmp.eq.s32.totalorder %s24, 1
      %p257 = por %p255, %p256
      %p258 = scmp.ne.s32.totalorder %s247, %s248
      %p259 = scmp.eq.s32.totalorder %s24, 0
      %p260 = por %p258, %p259
      %p261 = scmp.ne.s32.totalorder %s247, %s248
      %p262 = scmp.eq.s32.totalorder %s25, 1
      %p263 = por %p261, %p262
      %p265 = scmp.ne.s32.totalorder %s248, %s264
      %p266 = scmp.eq.s32.totalorder %s25, 0
      %p267 = por %p265, %p266
      %p268 = scmp.le.s32.totalorder 1, %s19
      %p269 = scmp.lt.s32.totalorder %s19, 3
      %p270 = pnand %p268, %p269
      %p271 = pneg %p270
      // Predicated region
      $region9: #{linear_attention_apply.1} parent=5 // pred_check
        _
      $region10: #{linear_attention_apply.1} parent=5 // pred_check_branch
        %273 = sbr.rel (%p270) target = $region12
      $region11: #{linear_attention_apply.1} parent=5 // pred_region
        %s274 = ssub.s32 %s19, 1
        // Predicated region
        $region13: #{linear_attention_apply.1} parent=11 // pred_check
          %p275 = pneg %p66
        $region14: #{linear_attention_apply.1} parent=11 // pred_check_branch
          %277 = sbr.rel (%p275) target = $region16
        $region15: #{linear_attention_apply.1} parent=11 // pred_region
          _
        $region16: #{linear_attention_apply.1} parent=11 // pred_fallthru
          _
        // Predicated region
        $region17: #{linear_attention_apply.1} parent=11 // pred_check
          %p278 = pneg %p87
        $region18: #{linear_attention_apply.1} parent=11 // pred_check_branch
          %280 = sbr.rel (%p278) target = $region20
        $region19: #{linear_attention_apply.1} parent=11 // pred_region
          _
        $region20: #{linear_attention_apply.1} parent=11 // pred_fallthru
          _
        // Predicated region
        $region21: #{linear_attention_apply.1} parent=11 // pred_check
          %p281 = pneg %p108
        $region22: #{linear_attention_apply.1} parent=11 // pred_check_branch
          %283 = sbr.rel (%p281) target = $region24
        $region23: #{linear_attention_apply.1} parent=11 // pred_region
          _
        $region24: #{linear_attention_apply.1} parent=11 // pred_fallthru
          _
        // Predicated region
        $region25: #{linear_attention_apply.1} parent=11 // pred_check
          %p284 = pneg %p129
        $region26: #{linear_attention_apply.1} parent=11 // pred_check_branch
          %286 = sbr.rel (%p284) target = $region28
        $region27: #{linear_attention_apply.1} parent=11 // pred_region
          _
        $region28: #{linear_attention_apply.1} parent=11 // pred_fallthru
          _
        // Predicated region
        $region29: #{linear_attention_apply.1} parent=11 // pred_check
          %p287 = pneg %p150
        $region30: #{linear_attention_apply.1} parent=11 // pred_check_branch
          %289 = sbr.rel (%p287) target = $region32
        $region31: #{linear_attention_apply.1} parent=11 // pred_region
          _
        $region32: #{linear_attention_apply.1} parent=11 // pred_fallthru
          _
        // Predicated region
        $region33: #{linear_attention_apply.1} parent=11 // pred_check
          %p290 = pneg %p171
        $region34: #{linear_attention_apply.1} parent=11 // pred_check_branch
          %292 = sbr.rel (%p290) target = $region36
        $region35: #{linear_attention_apply.1} parent=11 // pred_region
          _
        $region36: #{linear_attention_apply.1} parent=11 // pred_fallthru
          _
        // Predicated region
        $region37: #{linear_attention_apply.1} parent=11 // pred_check
          %p293 = pneg %p192
        $region38: #{linear_attention_apply.1} parent=11 // pred_check_branch
          %295 = sbr.rel (%p293) target = $region40
        $region39: #{linear_attention_apply.1} parent=11 // pred_region
          _
        $region40: #{linear_attention_apply.1} parent=11 // pred_fallthru
          _
        // Predicated region
        $region41: #{linear_attention_apply.1} parent=11 // pred_check
          %p296 = pneg %p213
        $region42: #{linear_attention_apply.1} parent=11 // pred_check_branch
          %298 = sbr.rel (%p296) target = $region44
        $region43: #{linear_attention_apply.1} parent=11 // pred_region
          _
        $region44: #{linear_attention_apply.1} parent=11 // pred_fallthru
          _
        // Predicated region
        $region45: #{linear_attention_apply.1} parent=11 // pred_check
          %p299 = pneg %p234
        $region46: #{linear_attention_apply.1} parent=11 // pred_check_branch
          %301 = sbr.rel (%p299) target = $region48
        $region47: #{linear_attention_apply.1} parent=11 // pred_region
          _
        $region48: #{linear_attention_apply.1} parent=11 // pred_fallthru
          _
      $region12: #{linear_attention_apply.1} parent=5 // pred_fallthru
        _
      %p302 = scmp.lt.s32.totalorder %s19, 2
      // Predicated region
      $region49: #{linear_attention_apply.1} parent=5 // pred_check
        %p303 = pneg %p302
      $region50: #{linear_attention_apply.1} parent=5 // pred_check_branch
        %305 = sbr.rel (%p303) target = $region52
      $region51: #{linear_attention_apply.1} parent=5 // pred_region
        // Predicated region
        $region53: #{linear_attention_apply.1} parent=51 // pred_check
          %p306 = pneg %p39
        $region54: #{linear_attention_apply.1} parent=51 // pred_check_branch
          %308 = sbr.rel (%p306) target = $region56
        $region55: #{linear_attention_apply.1} parent=51 // pred_region
          %p309 = scmp.lt.s32.totalorder %s19, 1
          %s310 = scalar_select %p309, %s19, 1
          %s311 = smul.addr %s310, 8
          %s312 = smul.addr %s311, 8
          %s313 = scalar_lea.vmem %s0, %s312
        $region56: #{linear_attention_apply.1} parent=51 // pred_fallthru
          _
      $region52: #{linear_attention_apply.1} parent=5 // pred_fallthru
        _
      %p314 = scmp.le.s32.totalorder 1, %s19
      %p315 = scmp.lt.s32.totalorder %s19, 3
      %p316 = pnand %p314, %p315
      %p317 = pneg %p316
      // Predicated region
      $region57: #{linear_attention_apply.1} parent=5 // pred_check
        _
      $region58: #{linear_attention_apply.1} parent=5 // pred_check_branch
        %319 = sbr.rel (%p316) target = $region60
      $region59: #{linear_attention_apply.1} parent=5 // pred_region
        %s320 = ssub.s32 %s19, 1
        %p321 = scmp.lt.s32.totalorder %s24, 1
        %s322 = scalar_select %p321, %s24, 1
        %s323 = smul.addr %s322, 8
        %s324 = smul.addr %s323, 8
        %s325 = scalar_lea.vmem %s0, %s324
        %p326 = pneg %p45
        %p327 = pneg %p42
        %p328 = pneg %p66
        %p329 = pneg %p63
        %p330 = pneg %p87
        %p331 = pneg %p84
        %p332 = pneg %p108
        %p333 = pneg %p105
        %p334 = pneg %p129
        %p335 = pneg %p126
        %p336 = pneg %p150
        %p337 = pneg %p147
        %p338 = pneg %p171
        %p339 = pneg %p168
        %p340 = pneg %p192
        %p341 = pneg %p189
        %p342 = pneg %p213
        %p343 = pneg %p210
        %p344 = pneg %p234
        %p345 = pneg %p231
        %p346 = pneg %p260
        %p347 = pneg %p257
        %s348 = sand.u32 %s247, 1
        %s349 = scalar_lea.sflag [#allocation3], %s348
        %s350 = sand.u32 %s247, 1
        %s351 = smul.addr %s350, 64
        %s352 = scalar_lea.vmem [#allocation2], %s351
        %p353 = scmp.lt.s32.totalorder %s24, 1
        %s354 = scalar_select %p353, %s24, 1
        %s355 = smul.addr %s354, 8
        %s356 = smul.addr %s355, 8
        %s357 = scalar_lea.vmem %s0, %s356
        %v359 = vld [vmem:[%s357] sm:$0xff]
        %v360 = vld [vmem:[%s357 + $0x8] sm:$0xff]
        %v361 = vld [vmem:[%s357 + $0x10] sm:$0xff]
        %v362 = vld [vmem:[%s357 + $0x18] sm:$0xff]
        %v363 = vld [vmem:[%s357 + $0x20] sm:$0xff]
        %v364 = vld [vmem:[%s357 + $0x28] sm:$0xff]
        %v365 = vld [vmem:[%s357 + $0x30] sm:$0xff]
        %v366 = vld [vmem:[%s357 + $0x38] sm:$0xff]
        %v367 = vpack.c.bf16 %v360, %v359
        %v368 = vpack.c.bf16 %v362, %v361
        %v369 = vpack.c.bf16 %v364, %v363
        %v370 = vpack.c.bf16 %v366, %v365
        %v371 = vld [vmem:[%s1] sm:$0xff]
        %v372 = vld [vmem:[%s1 + $0x8] sm:$0xff]
        %v373 = vld [vmem:[%s1 + $0x10] sm:$0xff]
        %v374 = vld [vmem:[%s1 + $0x18] sm:$0xff]
        %v375 = vld [vmem:[%s1 + $0x20] sm:$0xff]
        %v376 = vld [vmem:[%s1 + $0x28] sm:$0xff]
        %v377 = vld [vmem:[%s1 + $0x30] sm:$0xff]
        %v378 = vld [vmem:[%s1 + $0x38] sm:$0xff]
        %v379 = vld [vmem:[%s1 + $0x40] sm:$0xff]
        %v380 = vld [vmem:[%s1 + $0x48] sm:$0xff]
        %v381 = vld [vmem:[%s1 + $0x50] sm:$0xff]
        %v382 = vld [vmem:[%s1 + $0x58] sm:$0xff]
        %v383 = vld [vmem:[%s1 + $0x60] sm:$0xff]
        %v384 = vld [vmem:[%s1 + $0x68] sm:$0xff]
        %v385 = vld [vmem:[%s1 + $0x70] sm:$0xff]
        %v386 = vld [vmem:[%s1 + $0x78] sm:$0xff]
        %v387 = vld [vmem:[%s2] sm:$0x3]
        %v389 = vperm.slane %v387, 0
        %v390 = vperm.slane %v387, 1
        %v409 = vunpack.c.l.b16 %v371
        %v410 = vunpack.c.h.b16 %v371
        %v411 = vunpack.c.l.b16 %v372
        %v412 = vunpack.c.h.b16 %v372
        %v413 = vunpack.c.l.b16 %v373
        %v414 = vunpack.c.h.b16 %v373
        %v415 = vunpack.c.l.b16 %v374
        %v416 = vunpack.c.h.b16 %v374
        %v417 = vunpack.c.l.b16 %v375
        %v418 = vunpack.c.h.b16 %v375
        %v419 = vunpack.c.l.b16 %v376
        %v420 = vunpack.c.h.b16 %v376
        %v421 = vunpack.c.l.b16 %v377
        %v422 = vunpack.c.h.b16 %v377
        %v423 = vunpack.c.l.b16 %v378
        %v424 = vunpack.c.h.b16 %v378
        %v425 = vunpack.c.l.b16 %v379
        %v426 = vunpack.c.h.b16 %v379
        %v427 = vunpack.c.l.b16 %v380
        %v428 = vunpack.c.h.b16 %v380
        %v429 = vunpack.c.l.b16 %v381
        %v430 = vunpack.c.h.b16 %v381
        %v431 = vunpack.c.l.b16 %v382
        %v432 = vunpack.c.h.b16 %v382
        %v433 = vunpack.c.l.b16 %v383
        %v434 = vunpack.c.h.b16 %v383
        %v435 = vunpack.c.l.b16 %v384
        %v436 = vunpack.c.h.b16 %v384
        %v437 = vunpack.c.l.b16 %v385
        %v438 = vunpack.c.h.b16 %v385
        %v439 = vunpack.c.l.b16 %v386
        %v440 = vunpack.c.h.b16 %v386
        %v441 = vpack.c.b16 %v411, %v409
        %v442 = vpack.c.b16 %v412, %v410
        %v443 = vpack.c.b16 %v415, %v413
        %v444 = vpack.c.b16 %v416, %v414
        %v445 = vpack.c.b16 %v419, %v417
        %v446 = vpack.c.b16 %v420, %v418
        %v447 = vpack.c.b16 %v423, %v421
        %v448 = vpack.c.b16 %v424, %v422
        %v449 = vpack.c.b16 %v427, %v425
        %v450 = vpack.c.b16 %v428, %v426
        %v451 = vpack.c.b16 %v431, %v429
        %v452 = vpack.c.b16 %v432, %v430
        %v453 = vpack.c.b16 %v435, %v433
        %v454 = vpack.c.b16 %v436, %v434
        %v455 = vpack.c.b16 %v439, %v437
        %v456 = vpack.c.b16 %v440, %v438
        %473 = vmatpush.bf16.msra.mxu0 %v455
        %474 = vmatpush.bf16.msra.mxu0 %v453
        %475 = vmatpush.bf16.msra.mxu0 %v451
        %476 = vmatpush.bf16.msra.mxu0 %v449
        %477 = vmatpush.bf16.msra.mxu0 %v447
        %478 = vmatpush.bf16.msra.mxu0 %v445
        %479 = vmatpush.bf16.msra.mxu0 %v443
        %480 = vmatpush.bf16.msra.mxu0 %v441
        %481 = vmatmul.bf16.gmra.mxu0 %v367
        %v482 = vpop.f32.mrf.mxu0
        %v483 = vadd.f32 %v389, %v482
        %v484 = vpop.f32.mrf.mxu0
        %v485 = vadd.f32 %v389, %v484
        %486 = vmatmul.bf16.gmra.mxu0 %v368
        %v487 = vpop.f32.mrf.mxu0
        %v488 = vadd.f32 %v389, %v487
        %v489 = vpop.f32.mrf.mxu0
        %v490 = vadd.f32 %v389, %v489
        %491 = vmatmul.bf16.gmra.mxu0 %v369
        %v492 = vpop.f32.mrf.mxu0
        %v493 = vadd.f32 %v389, %v492
        %v494 = vpop.f32.mrf.mxu0
        %v495 = vadd.f32 %v389, %v494
        %496 = vmatmul.bf16.gmra.mxu0 %v370
        %v497 = vpop.f32.mrf.mxu0
        %v498 = vadd.f32 %v389, %v497
        %v499 = vpop.f32.mrf.mxu0
        %v500 = vadd.f32 %v389, %v499
        %501 = vdwg.mxu0
        %502 = vmatpush.bf16.msra.mxu0 %v456
        %503 = vmatpush.bf16.msra.mxu0 %v454
        %504 = vmatpush.bf16.msra.mxu0 %v452
        %505 = vmatpush.bf16.msra.mxu0 %v450
        %506 = vmatpush.bf16.msra.mxu0 %v448
        %507 = vmatpush.bf16.msra.mxu0 %v446
        %508 = vmatpush.bf16.msra.mxu0 %v444
        %509 = vmatpush.bf16.msra.mxu0 %v442
        %510 = vmatmul.bf16.gmra.mxu0 %v367
        %v511 = vpop.f32.mrf.mxu0
        %v512 = vadd.f32 %v390, %v511
        %v513 = vpop.f32.mrf.mxu0
        %v514 = vadd.f32 %v390, %v513
        %515 = vmatmul.bf16.gmra.mxu0 %v368
        %v516 = vpop.f32.mrf.mxu0
        %v517 = vadd.f32 %v390, %v516
        %v518 = vpop.f32.mrf.mxu0
        %v519 = vadd.f32 %v390, %v518
        %520 = vmatmul.bf16.gmra.mxu0 %v369
        %v521 = vpop.f32.mrf.mxu0
        %v522 = vadd.f32 %v390, %v521
        %v523 = vpop.f32.mrf.mxu0
        %v524 = vadd.f32 %v390, %v523
        %525 = vmatmul.bf16.gmra.mxu0 %v370
        %v526 = vpop.f32.mrf.mxu0
        %v527 = vadd.f32 %v390, %v526
        %v528 = vpop.f32.mrf.mxu0
        %v529 = vadd.f32 %v390, %v528
        %530 = vdwg.mxu0
        %vm531 = vcmp.gt.f32.partialorder %v483, 0.0
        %vm532 = vcmp.gt.f32.partialorder %v512, 0.0
        %vm533 = vcmp.gt.f32.partialorder %v485, 0.0
        %vm534 = vcmp.gt.f32.partialorder %v514, 0.0
        %vm535 = vcmp.gt.f32.partialorder %v488, 0.0
        %vm536 = vcmp.gt.f32.partialorder %v517, 0.0
        %vm537 = vcmp.gt.f32.partialorder %v490, 0.0
        %vm538 = vcmp.gt.f32.partialorder %v519, 0.0
        %vm539 = vcmp.gt.f32.partialorder %v493, 0.0
        %vm540 = vcmp.gt.f32.partialorder %v522, 0.0
        %vm541 = vcmp.gt.f32.partialorder %v495, 0.0
        %vm542 = vcmp.gt.f32.partialorder %v524, 0.0
        %vm543 = vcmp.gt.f32.partialorder %v498, 0.0
        %vm544 = vcmp.gt.f32.partialorder %v527, 0.0
        %vm545 = vcmp.gt.f32.partialorder %v500, 0.0
        %vm546 = vcmp.gt.f32.partialorder %v529, 0.0
        %v547 = vmin.f32 %v483, 0.0
        %v548 = vmin.f32 %v512, 0.0
        %v549 = vmin.f32 %v485, 0.0
        %v550 = vmin.f32 %v514, 0.0
        %v551 = vmin.f32 %v488, 0.0
        %v552 = vmin.f32 %v517, 0.0
        %v553 = vmin.f32 %v490, 0.0
        %v554 = vmin.f32 %v519, 0.0
        %v555 = vmin.f32 %v493, 0.0
        %v556 = vmin.f32 %v522, 0.0
        %v557 = vmin.f32 %v495, 0.0
        %v558 = vmin.f32 %v524, 0.0
        %v559 = vmin.f32 %v498, 0.0
        %v560 = vmin.f32 %v527, 0.0
        %v561 = vmin.f32 %v500, 0.0
        %v562 = vmin.f32 %v529, 0.0
        %v563 = vmul.f32 %v547, 1.442695
        %v564 = vpow.pop %v563
        %v565 = vmul.f32 %v548, 1.442695
        %v566 = vpow.pop %v565
        %v567 = vmul.f32 %v549, 1.442695
        %v568 = vpow.pop %v567
        %v569 = vmul.f32 %v550, 1.442695
        %v570 = vpow.pop %v569
        %v571 = vmul.f32 %v551, 1.442695
        %v572 = vpow.pop %v571
        %v573 = vmul.f32 %v552, 1.442695
        %v574 = vpow.pop %v573
        %v575 = vmul.f32 %v553, 1.442695
        %v576 = vpow.pop %v575
        %v577 = vmul.f32 %v554, 1.442695
        %v578 = vpow.pop %v577
        %v579 = vmul.f32 %v555, 1.442695
        %v580 = vpow.pop %v579
        %v581 = vmul.f32 %v556, 1.442695
        %v582 = vpow.pop %v581
        %v583 = vmul.f32 %v557, 1.442695
        %v584 = vpow.pop %v583
        %v585 = vmul.f32 %v558, 1.442695
        %v586 = vpow.pop %v585
        %v587 = vmul.f32 %v559, 1.442695
        %v588 = vpow.pop %v587
        %v589 = vmul.f32 %v560, 1.442695
        %v590 = vpow.pop %v589
        %v591 = vmul.f32 %v561, 1.442695
        %v592 = vpow.pop %v591
        %v593 = vmul.f32 %v562, 1.442695
        %v594 = vpow.pop %v593
        %v595 = vsub.f32 %v564, 1.0
        %v596 = vsub.f32 %v566, 1.0
        %v597 = vsub.f32 %v568, 1.0
        %v598 = vsub.f32 %v570, 1.0
        %v599 = vsub.f32 %v572, 1.0
        %v600 = vsub.f32 %v574, 1.0
        %v601 = vsub.f32 %v576, 1.0
        %v602 = vsub.f32 %v578, 1.0
        %v603 = vsub.f32 %v580, 1.0
        %v604 = vsub.f32 %v582, 1.0
        %v605 = vsub.f32 %v584, 1.0
        %v606 = vsub.f32 %v586, 1.0
        %v607 = vsub.f32 %v588, 1.0
        %v608 = vsub.f32 %v590, 1.0
        %v609 = vsub.f32 %v592, 1.0
        %v610 = vsub.f32 %v594, 1.0
        %v611 = vsel %vm531, %v483, %v595
        %v612 = vsel %vm532, %v512, %v596
        %v613 = vsel %vm533, %v485, %v597
        %v614 = vsel %vm534, %v514, %v598
        %v615 = vsel %vm535, %v488, %v599
        %v616 = vsel %vm536, %v517, %v600
        %v617 = vsel %vm537, %v490, %v601
        %v618 = vsel %vm538, %v519, %v602
        %v619 = vsel %vm539, %v493, %v603
        %v620 = vsel %vm540, %v522, %v604
        %v621 = vsel %vm541, %v495, %v605
        %v622 = vsel %vm542, %v524, %v606
        %v623 = vsel %vm543, %v498, %v607
        %v624 = vsel %vm544, %v527, %v608
        %v625 = vsel %vm545, %v500, %v609
        %v626 = vsel %vm546, %v529, %v610
        %v627 = vadd.f32 %v611, 1.0
        %v628 = vadd.f32 %v612, 1.0
        %v629 = vadd.f32 %v613, 1.0
        %v630 = vadd.f32 %v614, 1.0
        %v631 = vadd.f32 %v615, 1.0
        %v632 = vadd.f32 %v616, 1.0
        %v633 = vadd.f32 %v617, 1.0
        %v634 = vadd.f32 %v618, 1.0
        %v635 = vadd.f32 %v619, 1.0
        %v636 = vadd.f32 %v620, 1.0
        %v637 = vadd.f32 %v621, 1.0
        %v638 = vadd.f32 %v622, 1.0
        %v639 = vadd.f32 %v623, 1.0
        %v640 = vadd.f32 %v624, 1.0
        %v641 = vadd.f32 %v625, 1.0
        %v642 = vadd.f32 %v626, 1.0
        %v643 = vld [vmem:[%s3] sm:$0xff]
        %v644 = vld [vmem:[%s3 + $0x8] sm:$0xff]
        %v645 = vld [vmem:[%s3 + $0x10] sm:$0xff]
        %v646 = vld [vmem:[%s3 + $0x18] sm:$0xff]
        %v647 = vld [vmem:[%s3 + $0x20] sm:$0xff]
        %v648 = vld [vmem:[%s3 + $0x28] sm:$0xff]
        %v649 = vld [vmem:[%s3 + $0x30] sm:$0xff]
        %v650 = vld [vmem:[%s3 + $0x38] sm:$0xff]
        %v651 = vld [vmem:[%s4] sm:$0xff]
        %v652 = vld [vmem:[%s4 + $0x8] sm:$0xff]
        %v653 = vld [vmem:[%s4 + $0x10] sm:$0xff]
        %v654 = vld [vmem:[%s4 + $0x18] sm:$0xff]
        %v655 = vld [vmem:[%s4 + $0x20] sm:$0xff]
        %v656 = vld [vmem:[%s4 + $0x28] sm:$0xff]
        %v657 = vld [vmem:[%s4 + $0x30] sm:$0xff]
        %v658 = vld [vmem:[%s4 + $0x38] sm:$0xff]
        %v659 = vmul.f32 %v627, %v643
        %v660 = vmul.f32 %v629, %v644
        %v661 = vmul.f32 %v631, %v645
        %v662 = vmul.f32 %v633, %v646
        %v663 = vmul.f32 %v635, %v647
        %v664 = vmul.f32 %v637, %v648
        %v665 = vmul.f32 %v639, %v649
        %v666 = vmul.f32 %v641, %v650
        %667 = vrot.lane.b32.xlu0 %v627, 64
        %v668 = vpop.permute.xlu0 %667
        %669 = vrot.lane.b32.xlu0 %v629, 64
        %v670 = vpop.permute.xlu0 %669
        %671 = vrot.lane.b32.xlu0 %v631, 64
        %v672 = vpop.permute.xlu0 %671
        %673 = vrot.lane.b32.xlu0 %v633, 64
        %v674 = vpop.permute.xlu0 %673
        %675 = vrot.lane.b32.xlu0 %v635, 64
        %v676 = vpop.permute.xlu0 %675
        %677 = vrot.lane.b32.xlu0 %v637, 64
        %v678 = vpop.permute.xlu0 %677
        %679 = vrot.lane.b32.xlu0 %v639, 64
        %v680 = vpop.permute.xlu0 %679
        %681 = vrot.lane.b32.xlu0 %v641, 64
        %v682 = vpop.permute.xlu0 %681
        %v683 = vmul.f32 %v668, %v651
        %v684 = vmul.f32 %v670, %v652
        %v685 = vmul.f32 %v672, %v653
        %v686 = vmul.f32 %v674, %v654
        %v687 = vmul.f32 %v676, %v655
        %v688 = vmul.f32 %v678, %v656
        %v689 = vmul.f32 %v680, %v657
        %v690 = vmul.f32 %v682, %v658
        %v691 = vadd.f32 %v659, %v683
        %v692 = vadd.f32 %v660, %v684
        %v693 = vadd.f32 %v661, %v685
        %v694 = vadd.f32 %v662, %v686
        %v695 = vadd.f32 %v663, %v687
        %v696 = vadd.f32 %v664, %v688
        %v697 = vadd.f32 %v665, %v689
        %v698 = vadd.f32 %v666, %v690
        %v699 = vpack.c.bf16 %v692, %v691
        %v700 = vpack.c.bf16 %v694, %v693
        %v701 = vpack.c.bf16 %v696, %v695
        %v702 = vpack.c.bf16 %v698, %v697
        %v703 = vmul.f32 %v628, %v643
        %v704 = vmul.f32 %v630, %v644
        %v705 = vmul.f32 %v632, %v645
        %v706 = vmul.f32 %v634, %v646
        %v707 = vmul.f32 %v636, %v647
        %v708 = vmul.f32 %v638, %v648
        %v709 = vmul.f32 %v640, %v649
        %v710 = vmul.f32 %v642, %v650
        %711 = vrot.lane.b32.xlu0 %v628, 64
        %v712 = vpop.permute.xlu0 %711
        %713 = vrot.lane.b32.xlu0 %v630, 64
        %v714 = vpop.permute.xlu0 %713
        %715 = vrot.lane.b32.xlu0 %v632, 64
        %v716 = vpop.permute.xlu0 %715
        %717 = vrot.lane.b32.xlu0 %v634, 64
        %v718 = vpop.permute.xlu0 %717
        %719 = vrot.lane.b32.xlu0 %v636, 64
        %v720 = vpop.permute.xlu0 %719
        %721 = vrot.lane.b32.xlu0 %v638, 64
        %v722 = vpop.permute.xlu0 %721
        %723 = vrot.lane.b32.xlu0 %v640, 64
        %v724 = vpop.permute.xlu0 %723
        %725 = vrot.lane.b32.xlu0 %v642, 64
        %v726 = vpop.permute.xlu0 %725
        %v727 = vmul.f32 %v712, %v651
        %v728 = vmul.f32 %v714, %v652
        %v729 = vmul.f32 %v716, %v653
        %v730 = vmul.f32 %v718, %v654
        %v731 = vmul.f32 %v720, %v655
        %v732 = vmul.f32 %v722, %v656
        %v733 = vmul.f32 %v724, %v657
        %v734 = vmul.f32 %v726, %v658
        %v735 = vadd.f32 %v703, %v727
        %v736 = vadd.f32 %v704, %v728
        %v737 = vadd.f32 %v705, %v729
        %v738 = vadd.f32 %v706, %v730
        %v739 = vadd.f32 %v707, %v731
        %v740 = vadd.f32 %v708, %v732
        %v741 = vadd.f32 %v709, %v733
        %v742 = vadd.f32 %v710, %v734
        %v743 = vpack.c.bf16 %v736, %v735
        %v744 = vpack.c.bf16 %v738, %v737
        %v745 = vpack.c.bf16 %v740, %v739
        %v746 = vpack.c.bf16 %v742, %v741
        %v747 = vld [vmem:[%s7] sm:$0x1]
        %v748 = vld [vmem:[%s9] sm:$0xff]
        %v749 = vld [vmem:[%s9 + $0x8] sm:$0xff]
        %v750 = vld [vmem:[%s9 + $0x10] sm:$0xff]
        %v751 = vld [vmem:[%s9 + $0x18] sm:$0xff]
        %v752 = vld [vmem:[%s9 + $0x20] sm:$0xff]
        %v753 = vld [vmem:[%s9 + $0x28] sm:$0xff]
        %v754 = vld [vmem:[%s9 + $0x30] sm:$0xff]
        %v755 = vld [vmem:[%s9 + $0x38] sm:$0xff]
        %v756 = vrot.slane %v359, 7
        %v757 = vrot.slane %v360, 7
        %v758 = vrot.slane %v361, 7
        %v759 = vrot.slane %v362, 7
        %v760 = vrot.slane %v363, 7
        %v761 = vrot.slane %v364, 7
        %v762 = vrot.slane %v365, 7
        %v763 = vrot.slane %v366, 7
        %v764 = vlaneseq
        %v765 = vshrl.u32 %v764, 7
        %vm766 = vcmp.lt.s32.totalorder %v765, 1
        %v767 = vsel %vm766, %v762, %v763
        %v768 = vsel %vm766, %v761, %v762
        %v769 = vsel %vm766, %v760, %v761
        %v770 = vsel %vm766, %v759, %v760
        %v771 = vsel %vm766, %v758, %v759
        %v772 = vsel %vm766, %v757, %v758
        %v773 = vsel %vm766, %v756, %v757
        %v774 = vsel %vm766, %v763, %v756
        %v775 = vperm.slane %v747, 0
        %777 = vset.pattern.permute.xlu0 0
        %778 = vperm.xlu0 %777, %v748
        %v779 = vpop.permute.xlu0 %778
        %782 = vset.pattern.permute.xlu0 0
        %783 = vperm.xlu0 %782, %v749
        %v784 = vpop.permute.xlu0 %783
        %787 = vset.pattern.permute.xlu0 0
        %788 = vperm.xlu0 %787, %v750
        %v789 = vpop.permute.xlu0 %788
        %792 = vset.pattern.permute.xlu0 0
        %793 = vperm.xlu0 %792, %v751
        %v794 = vpop.permute.xlu0 %793
        %797 = vset.pattern.permute.xlu0 0
        %798 = vperm.xlu0 %797, %v752
        %v799 = vpop.permute.xlu0 %798
        %802 = vset.pattern.permute.xlu0 0
        %803 = vperm.xlu0 %802, %v753
        %v804 = vpop.permute.xlu0 %803
        %807 = vset.pattern.permute.xlu0 0
        %808 = vperm.xlu0 %807, %v754
        %v809 = vpop.permute.xlu0 %808
        %812 = vset.pattern.permute.xlu0 0
        %813 = vperm.xlu0 %812, %v755
        %v814 = vpop.permute.xlu0 %813
        %v816 = vmul.f32 %v775, %v779
        %v817 = vmul.f32 %v775, %v784
        %v818 = vmul.f32 %v775, %v789
        %v819 = vmul.f32 %v775, %v794
        %v820 = vmul.f32 %v775, %v799
        %v821 = vmul.f32 %v775, %v804
        %v822 = vmul.f32 %v775, %v809
        %v823 = vmul.f32 %v775, %v814
        %v824 = vmul.f32 %v767, %v816
        %v825 = vmul.f32 %v774, %v817
        %v826 = vmul.f32 %v773, %v818
        %v827 = vmul.f32 %v772, %v819
        %v828 = vmul.f32 %v771, %v820
        %v829 = vmul.f32 %v770, %v821
        %v830 = vmul.f32 %v769, %v822
        %v831 = vmul.f32 %v768, %v823
        %v832 = vadd.f32 %v824, 0.0
        %v833 = vadd.f32 %v825, 0.0
        %v834 = vadd.f32 %v826, 0.0
        %v835 = vadd.f32 %v827, 0.0
        %v836 = vadd.f32 %v828, 0.0
        %v837 = vadd.f32 %v829, 0.0
        %v838 = vadd.f32 %v830, 0.0
        %v839 = vadd.f32 %v831, 0.0
        %v840 = vld [vmem:[%s7 + $0x1] sm:$0x1]
        %s841 = scalar_lea.vmem %s9, 64
        %v842 = vld [vmem:[%s841] sm:$0xff]
        %v843 = vld [vmem:[%s841 + $0x8] sm:$0xff]
        %v844 = vld [vmem:[%s841 + $0x10] sm:$0xff]
        %v845 = vld [vmem:[%s841 + $0x18] sm:$0xff]
        %v846 = vld [vmem:[%s841 + $0x20] sm:$0xff]
        %v847 = vld [vmem:[%s841 + $0x28] sm:$0xff]
        %v848 = vld [vmem:[%s841 + $0x30] sm:$0xff]
        %v849 = vld [vmem:[%s841 + $0x38] sm:$0xff]
        %v850 = vperm.slane %v840, 0
        %852 = vset.pattern.permute.xlu0 0
        %853 = vperm.xlu0 %852, %v842
        %v854 = vpop.permute.xlu0 %853
        %857 = vset.pattern.permute.xlu0 0
        %858 = vperm.xlu0 %857, %v843
        %v859 = vpop.permute.xlu0 %858
        %862 = vset.pattern.permute.xlu0 0
        %863 = vperm.xlu0 %862, %v844
        %v864 = vpop.permute.xlu0 %863
        %867 = vset.pattern.permute.xlu0 0
        %868 = vperm.xlu0 %867, %v845
        %v869 = vpop.permute.xlu0 %868
        %872 = vset.pattern.permute.xlu0 0
        %873 = vperm.xlu0 %872, %v846
        %v874 = vpop.permute.xlu0 %873
        %877 = vset.pattern.permute.xlu0 0
        %878 = vperm.xlu0 %877, %v847
        %v879 = vpop.permute.xlu0 %878
        %882 = vset.pattern.permute.xlu0 0
        %883 = vperm.xlu0 %882, %v848
        %v884 = vpop.permute.xlu0 %883
        %887 = vset.pattern.permute.xlu0 0
        %888 = vperm.xlu0 %887, %v849
        %v889 = vpop.permute.xlu0 %888
        %v891 = vmul.f32 %v850, %v854
        %v892 = vmul.f32 %v850, %v859
        %v893 = vmul.f32 %v850, %v864
        %v894 = vmul.f32 %v850, %v869
        %v895 = vmul.f32 %v850, %v874
        %v896 = vmul.f32 %v850, %v879
        %v897 = vmul.f32 %v850, %v884
        %v898 = vmul.f32 %v850, %v889
        %v899 = vmul.f32 %v366, %v891
        %v900 = vmul.f32 %v359, %v892
        %v901 = vmul.f32 %v360, %v893
        %v902 = vmul.f32 %v361, %v894
        %v903 = vmul.f32 %v362, %v895
        %v904 = vmul.f32 %v363, %v896
        %v905 = vmul.f32 %v364, %v897
        %v906 = vmul.f32 %v365, %v898
        %v907 = vadd.f32 %v832, %v899
        %v908 = vadd.f32 %v833, %v900
        %v909 = vadd.f32 %v834, %v901
        %v910 = vadd.f32 %v835, %v902
        %v911 = vadd.f32 %v836, %v903
        %v912 = vadd.f32 %v837, %v904
        %v913 = vadd.f32 %v838, %v905
        %v914 = vadd.f32 %v839, %v906
        %v915 = vld [vmem:[%s7 + $0x2] sm:$0x1]
        %s916 = scalar_lea.vmem %s9, 128
        %v917 = vld [vmem:[%s916] sm:$0xff]
        %v918 = vld [vmem:[%s916 + $0x8] sm:$0xff]
        %v919 = vld [vmem:[%s916 + $0x10] sm:$0xff]
        %v920 = vld [vmem:[%s916 + $0x18] sm:$0xff]
        %v921 = vld [vmem:[%s916 + $0x20] sm:$0xff]
        %v922 = vld [vmem:[%s916 + $0x28] sm:$0xff]
        %v923 = vld [vmem:[%s916 + $0x30] sm:$0xff]
        %v924 = vld [vmem:[%s916 + $0x38] sm:$0xff]
        %v925 = vrot.slane %v359, 1
        %v926 = vrot.slane %v360, 1
        %v927 = vrot.slane %v361, 1
        %v928 = vrot.slane %v362, 1
        %v929 = vrot.slane %v363, 1
        %v930 = vrot.slane %v364, 1
        %v931 = vrot.slane %v365, 1
        %v932 = vrot.slane %v366, 1
        %vm933 = vcmp.lt.s32.totalorder %v765, 7
        %v934 = vsel %vm933, %v931, %v932
        %v935 = vsel %vm933, %v930, %v931
        %v936 = vsel %vm933, %v929, %v930
        %v937 = vsel %vm933, %v928, %v929
        %v938 = vsel %vm933, %v927, %v928
        %v939 = vsel %vm933, %v926, %v927
        %v940 = vsel %vm933, %v925, %v926
        %v941 = vsel %vm933, %v932, %v925
        %v942 = vperm.slane %v915, 0
        %944 = vset.pattern.permute.xlu0 0
        %945 = vperm.xlu0 %944, %v917
        %v946 = vpop.permute.xlu0 %945
        %949 = vset.pattern.permute.xlu0 0
        %950 = vperm.xlu0 %949, %v918
        %v951 = vpop.permute.xlu0 %950
        %954 = vset.pattern.permute.xlu0 0
        %955 = vperm.xlu0 %954, %v919
        %v956 = vpop.permute.xlu0 %955
        %959 = vset.pattern.permute.xlu0 0
        %960 = vperm.xlu0 %959, %v920
        %v961 = vpop.permute.xlu0 %960
        %964 = vset.pattern.permute.xlu0 0
        %965 = vperm.xlu0 %964, %v921
        %v966 = vpop.permute.xlu0 %965
        %969 = vset.pattern.permute.xlu0 0
        %970 = vperm.xlu0 %969, %v922
        %v971 = vpop.permute.xlu0 %970
        %974 = vset.pattern.permute.xlu0 0
        %975 = vperm.xlu0 %974, %v923
        %v976 = vpop.permute.xlu0 %975
        %979 = vset.pattern.permute.xlu0 0
        %980 = vperm.xlu0 %979, %v924
        %v981 = vpop.permute.xlu0 %980
        %v983 = vmul.f32 %v942, %v946
        %v984 = vmul.f32 %v942, %v951
        %v985 = vmul.f32 %v942, %v956
        %v986 = vmul.f32 %v942, %v961
        %v987 = vmul.f32 %v942, %v966
        %v988 = vmul.f32 %v942, %v971
        %v989 = vmul.f32 %v942, %v976
        %v990 = vmul.f32 %v942, %v981
        %v991 = vmul.f32 %v941, %v983
        %v992 = vmul.f32 %v940, %v984
        %v993 = vmul.f32 %v939, %v985
        %v994 = vmul.f32 %v938, %v986
        %v995 = vmul.f32 %v937, %v987
        %v996 = vmul.f32 %v936, %v988
        %v997 = vmul.f32 %v935, %v989
        %v998 = vmul.f32 %v934, %v990
        %v999 = vadd.f32 %v907, %v991
        %v1000 = vadd.f32 %v908, %v992
        %v1001 = vadd.f32 %v909, %v993
        %v1002 = vadd.f32 %v910, %v994
        %v1003 = vadd.f32 %v911, %v995
        %v1004 = vadd.f32 %v912, %v996
        %v1005 = vadd.f32 %v913, %v997
        %v1006 = vadd.f32 %v914, %v998
        %v1007 = vld [vmem:[%s7 + $0x3] sm:$0x1]
        %s1008 = scalar_lea.vmem %s9, 192
        %v1009 = vld [vmem:[%s1008] sm:$0xff]
        %v1010 = vld [vmem:[%s1008 + $0x8] sm:$0xff]
        %v1011 = vld [vmem:[%s1008 + $0x10] sm:$0xff]
        %v1012 = vld [vmem:[%s1008 + $0x18] sm:$0xff]
        %v1013 = vld [vmem:[%s1008 + $0x20] sm:$0xff]
        %v1014 = vld [vmem:[%s1008 + $0x28] sm:$0xff]
        %v1015 = vld [vmem:[%s1008 + $0x30] sm:$0xff]
        %v1016 = vld [vmem:[%s1008 + $0x38] sm:$0xff]
        %v1017 = vperm.slane %v1007, 0
        %1019 = vset.pattern.permute.xlu0 0
        %1020 = vperm.xlu0 %1019, %v1009
        %v1021 = vpop.permute.xlu0 %1020
        %1024 = vset.pattern.permute.xlu0 0
        %1025 = vperm.xlu0 %1024, %v1010
        %v1026 = vpop.permute.xlu0 %1025
        %1029 = vset.pattern.permute.xlu0 0
        %1030 = vperm.xlu0 %1029, %v1011
        %v1031 = vpop.permute.xlu0 %1030
        %1034 = vset.pattern.permute.xlu0 0
        %1035 = vperm.xlu0 %1034, %v1012
        %v1036 = vpop.permute.xlu0 %1035
        %1039 = vset.pattern.permute.xlu0 0
        %1040 = vperm.xlu0 %1039, %v1013
        %v1041 = vpop.permute.xlu0 %1040
        %1044 = vset.pattern.permute.xlu0 0
        %1045 = vperm.xlu0 %1044, %v1014
        %v1046 = vpop.permute.xlu0 %1045
        %1049 = vset.pattern.permute.xlu0 0
        %1050 = vperm.xlu0 %1049, %v1015
        %v1051 = vpop.permute.xlu0 %1050
        %1054 = vset.pattern.permute.xlu0 0
        %1055 = vperm.xlu0 %1054, %v1016
        %v1056 = vpop.permute.xlu0 %1055
        %v1058 = vmul.f32 %v1017, %v1021
        %v1059 = vmul.f32 %v1017, %v1026
        %v1060 = vmul.f32 %v1017, %v1031
        %v1061 = vmul.f32 %v1017, %v1036
        %v1062 = vmul.f32 %v1017, %v1041
        %v1063 = vmul.f32 %v1017, %v1046
        %v1064 = vmul.f32 %v1017, %v1051
        %v1065 = vmul.f32 %v1017, %v1056
        %v1066 = vmul.f32 %v774, %v1058
        %v1067 = vmul.f32 %v773, %v1059
        %v1068 = vmul.f32 %v772, %v1060
        %v1069 = vmul.f32 %v771, %v1061
        %v1070 = vmul.f32 %v770, %v1062
        %v1071 = vmul.f32 %v769, %v1063
        %v1072 = vmul.f32 %v768, %v1064
        %v1073 = vmul.f32 %v767, %v1065
        %v1074 = vadd.f32 %v999, %v1066
        %v1075 = vadd.f32 %v1000, %v1067
        %v1076 = vadd.f32 %v1001, %v1068
        %v1077 = vadd.f32 %v1002, %v1069
        %v1078 = vadd.f32 %v1003, %v1070
        %v1079 = vadd.f32 %v1004, %v1071
        %v1080 = vadd.f32 %v1005, %v1072
        %v1081 = vadd.f32 %v1006, %v1073
        %v1082 = vld [vmem:[%s7 + $0x4] sm:$0x1]
        %s1083 = scalar_lea.vmem %s9, 256
        %v1084 = vld [vmem:[%s1083] sm:$0xff]
        %v1085 = vld [vmem:[%s1083 + $0x8] sm:$0xff]
        %v1086 = vld [vmem:[%s1083 + $0x10] sm:$0xff]
        %v1087 = vld [vmem:[%s1083 + $0x18] sm:$0xff]
        %v1088 = vld [vmem:[%s1083 + $0x20] sm:$0xff]
        %v1089 = vld [vmem:[%s1083 + $0x28] sm:$0xff]
        %v1090 = vld [vmem:[%s1083 + $0x30] sm:$0xff]
        %v1091 = vld [vmem:[%s1083 + $0x38] sm:$0xff]
        %v1092 = vperm.slane %v1082, 0
        %1094 = vset.pattern.permute.xlu0 0
        %1095 = vperm.xlu0 %1094, %v1084
        %v1096 = vpop.permute.xlu0 %1095
        %1099 = vset.pattern.permute.xlu0 0
        %1100 = vperm.xlu0 %1099, %v1085
        %v1101 = vpop.permute.xlu0 %1100
        %1104 = vset.pattern.permute.xlu0 0
        %1105 = vperm.xlu0 %1104, %v1086
        %v1106 = vpop.permute.xlu0 %1105
        %1109 = vset.pattern.permute.xlu0 0
        %1110 = vperm.xlu0 %1109, %v1087
        %v1111 = vpop.permute.xlu0 %1110
        %1114 = vset.pattern.permute.xlu0 0
        %1115 = vperm.xlu0 %1114, %v1088
        %v1116 = vpop.permute.xlu0 %1115
        %1119 = vset.pattern.permute.xlu0 0
        %1120 = vperm.xlu0 %1119, %v1089
        %v1121 = vpop.permute.xlu0 %1120
        %1124 = vset.pattern.permute.xlu0 0
        %1125 = vperm.xlu0 %1124, %v1090
        %v1126 = vpop.permute.xlu0 %1125
        %1129 = vset.pattern.permute.xlu0 0
        %1130 = vperm.xlu0 %1129, %v1091
        %v1131 = vpop.permute.xlu0 %1130
        %v1133 = vmul.f32 %v1092, %v1096
        %v1134 = vmul.f32 %v1092, %v1101
        %v1135 = vmul.f32 %v1092, %v1106
        %v1136 = vmul.f32 %v1092, %v1111
        %v1137 = vmul.f32 %v1092, %v1116
        %v1138 = vmul.f32 %v1092, %v1121
        %v1139 = vmul.f32 %v1092, %v1126
        %v1140 = vmul.f32 %v1092, %v1131
        %v1141 = vmul.f32 %v359, %v1133
        %v1142 = vmul.f32 %v360, %v1134
        %v1143 = vmul.f32 %v361, %v1135
        %v1144 = vmul.f32 %v362, %v1136
        %v1145 = vmul.f32 %v363, %v1137
        %v1146 = vmul.f32 %v364, %v1138
        %v1147 = vmul.f32 %v365, %v1139
        %v1148 = vmul.f32 %v366, %v1140
        %v1149 = vadd.f32 %v1074, %v1141
        %v1150 = vadd.f32 %v1075, %v1142
        %v1151 = vadd.f32 %v1076, %v1143
        %v1152 = vadd.f32 %v1077, %v1144
        %v1153 = vadd.f32 %v1078, %v1145
        %v1154 = vadd.f32 %v1079, %v1146
        %v1155 = vadd.f32 %v1080, %v1147
        %v1156 = vadd.f32 %v1081, %v1148
        %v1157 = vld [vmem:[%s7 + $0x5] sm:$0x1]
        %s1158 = scalar_lea.vmem %s9, 320
        %v1159 = vld [vmem:[%s1158] sm:$0xff]
        %v1160 = vld [vmem:[%s1158 + $0x8] sm:$0xff]
        %v1161 = vld [vmem:[%s1158 + $0x10] sm:$0xff]
        %v1162 = vld [vmem:[%s1158 + $0x18] sm:$0xff]
        %v1163 = vld [vmem:[%s1158 + $0x20] sm:$0xff]
        %v1164 = vld [vmem:[%s1158 + $0x28] sm:$0xff]
        %v1165 = vld [vmem:[%s1158 + $0x30] sm:$0xff]
        %v1166 = vld [vmem:[%s1158 + $0x38] sm:$0xff]
        %v1167 = vperm.slane %v1157, 0
        %1169 = vset.pattern.permute.xlu0 0
        %1170 = vperm.xlu0 %1169, %v1159
        %v1171 = vpop.permute.xlu0 %1170
        %1174 = vset.pattern.permute.xlu0 0
        %1175 = vperm.xlu0 %1174, %v1160
        %v1176 = vpop.permute.xlu0 %1175
        %1179 = vset.pattern.permute.xlu0 0
        %1180 = vperm.xlu0 %1179, %v1161
        %v1181 = vpop.permute.xlu0 %1180
        %1184 = vset.pattern.permute.xlu0 0
        %1185 = vperm.xlu0 %1184, %v1162
        %v1186 = vpop.permute.xlu0 %1185
        %1189 = vset.pattern.permute.xlu0 0
        %1190 = vperm.xlu0 %1189, %v1163
        %v1191 = vpop.permute.xlu0 %1190
        %1194 = vset.pattern.permute.xlu0 0
        %1195 = vperm.xlu0 %1194, %v1164
        %v1196 = vpop.permute.xlu0 %1195
        %1199 = vset.pattern.permute.xlu0 0
        %1200 = vperm.xlu0 %1199, %v1165
        %v1201 = vpop.permute.xlu0 %1200
        %1204 = vset.pattern.permute.xlu0 0
        %1205 = vperm.xlu0 %1204, %v1166
        %v1206 = vpop.permute.xlu0 %1205
        %v1208 = vmul.f32 %v1167, %v1171
        %v1209 = vmul.f32 %v1167, %v1176
        %v1210 = vmul.f32 %v1167, %v1181
        %v1211 = vmul.f32 %v1167, %v1186
        %v1212 = vmul.f32 %v1167, %v1191
        %v1213 = vmul.f32 %v1167, %v1196
        %v1214 = vmul.f32 %v1167, %v1201
        %v1215 = vmul.f32 %v1167, %v1206
        %v1216 = vmul.f32 %v940, %v1208
        %v1217 = vmul.f32 %v939, %v1209
        %v1218 = vmul.f32 %v938, %v1210
        %v1219 = vmul.f32 %v937, %v1211
        %v1220 = vmul.f32 %v936, %v1212
        %v1221 = vmul.f32 %v935, %v1213
        %v1222 = vmul.f32 %v934, %v1214
        %v1223 = vmul.f32 %v941, %v1215
        %v1224 = vadd.f32 %v1149, %v1216
        %v1225 = vadd.f32 %v1150, %v1217
        %v1226 = vadd.f32 %v1151, %v1218
        %v1227 = vadd.f32 %v1152, %v1219
        %v1228 = vadd.f32 %v1153, %v1220
        %v1229 = vadd.f32 %v1154, %v1221
        %v1230 = vadd.f32 %v1155, %v1222
        %v1231 = vadd.f32 %v1156, %v1223
        %v1232 = vld [vmem:[%s7 + $0x6] sm:$0x1]
        %s1233 = scalar_lea.vmem %s9, 384
        %v1234 = vld [vmem:[%s1233] sm:$0xff]
        %v1235 = vld [vmem:[%s1233 + $0x8] sm:$0xff]
        %v1236 = vld [vmem:[%s1233 + $0x10] sm:$0xff]
        %v1237 = vld [vmem:[%s1233 + $0x18] sm:$0xff]
        %v1238 = vld [vmem:[%s1233 + $0x20] sm:$0xff]
        %v1239 = vld [vmem:[%s1233 + $0x28] sm:$0xff]
        %v1240 = vld [vmem:[%s1233 + $0x30] sm:$0xff]
        %v1241 = vld [vmem:[%s1233 + $0x38] sm:$0xff]
        %v1242 = vperm.slane %v1232, 0
        %1244 = vset.pattern.permute.xlu0 0
        %1245 = vperm.xlu0 %1244, %v1234
        %v1246 = vpop.permute.xlu0 %1245
        %1249 = vset.pattern.permute.xlu0 0
        %1250 = vperm.xlu0 %1249, %v1235
        %v1251 = vpop.permute.xlu0 %1250
        %1254 = vset.pattern.permute.xlu0 0
        %1255 = vperm.xlu0 %1254, %v1236
        %v1256 = vpop.permute.xlu0 %1255
        %1259 = vset.pattern.permute.xlu0 0
        %1260 = vperm.xlu0 %1259, %v1237
        %v1261 = vpop.permute.xlu0 %1260
        %1264 = vset.pattern.permute.xlu0 0
        %1265 = vperm.xlu0 %1264, %v1238
        %v1266 = vpop.permute.xlu0 %1265
        %1269 = vset.pattern.permute.xlu0 0
        %1270 = vperm.xlu0 %1269, %v1239
        %v1271 = vpop.permute.xlu0 %1270
        %1274 = vset.pattern.permute.xlu0 0
        %1275 = vperm.xlu0 %1274, %v1240
        %v1276 = vpop.permute.xlu0 %1275
        %1279 = vset.pattern.permute.xlu0 0
        %1280 = vperm.xlu0 %1279, %v1241
        %v1281 = vpop.permute.xlu0 %1280
        %v1283 = vmul.f32 %v1242, %v1246
        %v1284 = vmul.f32 %v1242, %v1251
        %v1285 = vmul.f32 %v1242, %v1256
        %v1286 = vmul.f32 %v1242, %v1261
        %v1287 = vmul.f32 %v1242, %v1266
        %v1288 = vmul.f32 %v1242, %v1271
        %v1289 = vmul.f32 %v1242, %v1276
        %v1290 = vmul.f32 %v1242, %v1281
        %v1291 = vmul.f32 %v773, %v1283
        %v1292 = vmul.f32 %v772, %v1284
        %v1293 = vmul.f32 %v771, %v1285
        %v1294 = vmul.f32 %v770, %v1286
        %v1295 = vmul.f32 %v769, %v1287
        %v1296 = vmul.f32 %v768, %v1288
        %v1297 = vmul.f32 %v767, %v1289
        %v1298 = vmul.f32 %v774, %v1290
        %v1299 = vadd.f32 %v1224, %v1291
        %v1300 = vadd.f32 %v1225, %v1292
        %v1301 = vadd.f32 %v1226, %v1293
        %v1302 = vadd.f32 %v1227, %v1294
        %v1303 = vadd.f32 %v1228, %v1295
        %v1304 = vadd.f32 %v1229, %v1296
        %v1305 = vadd.f32 %v1230, %v1297
        %v1306 = vadd.f32 %v1231, %v1298
        %v1307 = vld [vmem:[%s7 + $0x7] sm:$0x1]
        %s1308 = scalar_lea.vmem %s9, 448
        %v1309 = vld [vmem:[%s1308] sm:$0xff]
        %v1310 = vld [vmem:[%s1308 + $0x8] sm:$0xff]
        %v1311 = vld [vmem:[%s1308 + $0x10] sm:$0xff]
        %v1312 = vld [vmem:[%s1308 + $0x18] sm:$0xff]
        %v1313 = vld [vmem:[%s1308 + $0x20] sm:$0xff]
        %v1314 = vld [vmem:[%s1308 + $0x28] sm:$0xff]
        %v1315 = vld [vmem:[%s1308 + $0x30] sm:$0xff]
        %v1316 = vld [vmem:[%s1308 + $0x38] sm:$0xff]
        %v1317 = vperm.slane %v1307, 0
        %1319 = vset.pattern.permute.xlu0 0
        %1320 = vperm.xlu0 %1319, %v1309
        %v1321 = vpop.permute.xlu0 %1320
        %1324 = vset.pattern.permute.xlu0 0
        %1325 = vperm.xlu0 %1324, %v1310
        %v1326 = vpop.permute.xlu0 %1325
        %1329 = vset.pattern.permute.xlu0 0
        %1330 = vperm.xlu0 %1329, %v1311
        %v1331 = vpop.permute.xlu0 %1330
        %1334 = vset.pattern.permute.xlu0 0
        %1335 = vperm.xlu0 %1334, %v1312
        %v1336 = vpop.permute.xlu0 %1335
        %1339 = vset.pattern.permute.xlu0 0
        %1340 = vperm.xlu0 %1339, %v1313
        %v1341 = vpop.permute.xlu0 %1340
        %1344 = vset.pattern.permute.xlu0 0
        %1345 = vperm.xlu0 %1344, %v1314
        %v1346 = vpop.permute.xlu0 %1345
        %1349 = vset.pattern.permute.xlu0 0
        %1350 = vperm.xlu0 %1349, %v1315
        %v1351 = vpop.permute.xlu0 %1350
        %1354 = vset.pattern.permute.xlu0 0
        %1355 = vperm.xlu0 %1354, %v1316
        %v1356 = vpop.permute.xlu0 %1355
        %v1358 = vmul.f32 %v1317, %v1321
        %v1359 = vmul.f32 %v1317, %v1326
        %v1360 = vmul.f32 %v1317, %v1331
        %v1361 = vmul.f32 %v1317, %v1336
        %v1362 = vmul.f32 %v1317, %v1341
        %v1363 = vmul.f32 %v1317, %v1346
        %v1364 = vmul.f32 %v1317, %v1351
        %v1365 = vmul.f32 %v1317, %v1356
        %v1366 = vmul.f32 %v360, %v1358
        %v1367 = vmul.f32 %v361, %v1359
        %v1368 = vmul.f32 %v362, %v1360
        %v1369 = vmul.f32 %v363, %v1361
        %v1370 = vmul.f32 %v364, %v1362
        %v1371 = vmul.f32 %v365, %v1363
        %v1372 = vmul.f32 %v366, %v1364
        %v1373 = vmul.f32 %v359, %v1365
        %v1374 = vadd.f32 %v1299, %v1366
        %v1375 = vadd.f32 %v1300, %v1367
        %v1376 = vadd.f32 %v1301, %v1368
        %v1377 = vadd.f32 %v1302, %v1369
        %v1378 = vadd.f32 %v1303, %v1370
        %v1379 = vadd.f32 %v1304, %v1371
        %v1380 = vadd.f32 %v1305, %v1372
        %v1381 = vadd.f32 %v1306, %v1373
        %v1382 = vld [vmem:[%s7 + $0x8] sm:$0x1]
        %s1383 = scalar_lea.vmem %s9, 512
        %v1384 = vld [vmem:[%s1383] sm:$0xff]
        %v1385 = vld [vmem:[%s1383 + $0x8] sm:$0xff]
        %v1386 = vld [vmem:[%s1383 + $0x10] sm:$0xff]
        %v1387 = vld [vmem:[%s1383 + $0x18] sm:$0xff]
        %v1388 = vld [vmem:[%s1383 + $0x20] sm:$0xff]
        %v1389 = vld [vmem:[%s1383 + $0x28] sm:$0xff]
        %v1390 = vld [vmem:[%s1383 + $0x30] sm:$0xff]
        %v1391 = vld [vmem:[%s1383 + $0x38] sm:$0xff]
        %v1392 = vperm.slane %v1382, 0
        %1394 = vset.pattern.permute.xlu0 0
        %1395 = vperm.xlu0 %1394, %v1384
        %v1396 = vpop.permute.xlu0 %1395
        %1399 = vset.pattern.permute.xlu0 0
        %1400 = vperm.xlu0 %1399, %v1385
        %v1401 = vpop.permute.xlu0 %1400
        %1404 = vset.pattern.permute.xlu0 0
        %1405 = vperm.xlu0 %1404, %v1386
        %v1406 = vpop.permute.xlu0 %1405
        %1409 = vset.pattern.permute.xlu0 0
        %1410 = vperm.xlu0 %1409, %v1387
        %v1411 = vpop.permute.xlu0 %1410
        %1414 = vset.pattern.permute.xlu0 0
        %1415 = vperm.xlu0 %1414, %v1388
        %v1416 = vpop.permute.xlu0 %1415
        %1419 = vset.pattern.permute.xlu0 0
        %1420 = vperm.xlu0 %1419, %v1389
        %v1421 = vpop.permute.xlu0 %1420
        %1424 = vset.pattern.permute.xlu0 0
        %1425 = vperm.xlu0 %1424, %v1390
        %v1426 = vpop.permute.xlu0 %1425
        %1429 = vset.pattern.permute.xlu0 0
        %1430 = vperm.xlu0 %1429, %v1391
        %v1431 = vpop.permute.xlu0 %1430
        %v1433 = vmul.f32 %v1392, %v1396
        %v1434 = vmul.f32 %v1392, %v1401
        %v1435 = vmul.f32 %v1392, %v1406
        %v1436 = vmul.f32 %v1392, %v1411
        %v1437 = vmul.f32 %v1392, %v1416
        %v1438 = vmul.f32 %v1392, %v1421
        %v1439 = vmul.f32 %v1392, %v1426
        %v1440 = vmul.f32 %v1392, %v1431
        %v1441 = vmul.f32 %v939, %v1433
        %v1442 = vmul.f32 %v938, %v1434
        %v1443 = vmul.f32 %v937, %v1435
        %v1444 = vmul.f32 %v936, %v1436
        %v1445 = vmul.f32 %v935, %v1437
        %v1446 = vmul.f32 %v934, %v1438
        %v1447 = vmul.f32 %v941, %v1439
        %v1448 = vmul.f32 %v940, %v1440
        %v1449 = vadd.f32 %v1374, %v1441
        %v1450 = vadd.f32 %v1375, %v1442
        %v1451 = vadd.f32 %v1376, %v1443
        %v1452 = vadd.f32 %v1377, %v1444
        %v1453 = vadd.f32 %v1378, %v1445
        %v1454 = vadd.f32 %v1379, %v1446
        %v1455 = vadd.f32 %v1380, %v1447
        %v1456 = vadd.f32 %v1381, %v1448
        %v1457 = vadd.f32 %v628, %v630
        %v1458 = vadd.f32 %v1457, %v632
        %v1459 = vadd.f32 %v1458, %v634
        %v1460 = vadd.f32 %v1459, %v636
        %v1461 = vadd.f32 %v1460, %v638
        %v1462 = vadd.f32 %v1461, %v640
        %v1463 = vadd.f32 %v1462, %v642
        %v1464 = vrot.slane %v1463, 4
        %v1465 = vadd.f32 %v1463, %v1464
        %v1466 = vrot.slane %v1465, 2
        %v1467 = vadd.f32 %v1465, %v1466
        %v1468 = vrot.slane %v1467, 1
        %v1469 = vadd.f32 %v1467, %v1468
        %v1470 = vrcp.pop 64.0
        %v1471 = vmul.f32 64.0, %v1470
        %v1472 = vsub.f32 1.0, %v1471
        %v1473 = vmul.f32 %v1470, %v1472
        %v1474 = vadd.f32 %v1470, %v1473
        %vm1475 = vweird.f32 %v1470
        %v1476 = vsel %vm1475, %v1470, %v1474
        %v1477 = vmul.f32 %v1469, %v1476
        %v1478 = vmul.f32 %v627, %v1477
        %v1479 = vmul.f32 %v629, %v1477
        %v1480 = vmul.f32 %v631, %v1477
        %v1481 = vmul.f32 %v633, %v1477
        %v1482 = vmul.f32 %v635, %v1477
        %v1483 = vmul.f32 %v637, %v1477
        %v1484 = vmul.f32 %v639, %v1477
        %v1485 = vmul.f32 %v641, %v1477
        %v1486 = vpack.c.bf16 %v1479, %v1478
        %v1487 = vpack.c.bf16 %v1481, %v1480
        %v1488 = vpack.c.bf16 %v1483, %v1482
        %v1489 = vpack.c.bf16 %v1485, %v1484
        %v1490 = vld [vmem:[%s5] sm:$0xf]
        %v1491 = vld [vmem:[%s5 + $0x4] sm:$0xf]
        %v1492 = vld [vmem:[%s5 + $0x8] sm:$0xf]
        %v1493 = vld [vmem:[%s5 + $0xc] sm:$0xf]
        %v1494 = vld [vmem:[%s5 + $0x10] sm:$0xf]
        %v1495 = vld [vmem:[%s5 + $0x14] sm:$0xf]
        %v1496 = vld [vmem:[%s5 + $0x18] sm:$0xf]
        %v1497 = vld [vmem:[%s5 + $0x1c] sm:$0xf]
        %v1498 = vld [vmem:[%s5 + $0x20] sm:$0xf]
        %v1499 = vld [vmem:[%s5 + $0x24] sm:$0xf]
        %v1500 = vld [vmem:[%s5 + $0x28] sm:$0xf]
        %v1501 = vld [vmem:[%s5 + $0x2c] sm:$0xf]
        %v1502 = vld [vmem:[%s5 + $0x30] sm:$0xf]
        %v1503 = vld [vmem:[%s5 + $0x34] sm:$0xf]
        %v1504 = vld [vmem:[%s5 + $0x38] sm:$0xf]
        %v1505 = vld [vmem:[%s5 + $0x3c] sm:$0xf]
        %1506 = vxpose.xlu0.c.b16.start [1/8] %v743, 128
        %1507 = vxpose.xlu0.c.b16.cont [2/8] %v744, 128
        %1508 = vxpose.xlu0.c.b16.cont [3/8] %v745, 128
        %1509 = vxpose.xlu0.c.b16.cont [4/8] %v746, 128
        %1510 = vxpose.xlu0.c.b16.cont [5/8] 0, 128
        %1511 = vxpose.xlu0.c.b16.cont [6/8] 0, 128
        %1512 = vxpose.xlu0.c.b16.cont [7/8] 0, 128
        %1513 = vxpose.xlu0.c.b16.end [8/8] 0, 128
        %v1514 = vpop.trf.xlu0
        %v1515 = vpop.trf.xlu0
        %v1516 = vpop.trf.xlu0
        %v1517 = vpop.trf.xlu0
        %v1518 = vpop.trf.xlu0
        %v1519 = vpop.trf.xlu0
        %v1520 = vpop.trf.xlu0
        %v1521 = vpop.trf.xlu0
        %vm1522 = vcmask 523264
        %v1524 = vsel %vm1522, %v1514, 0
        %v1527 = vsel %vm1522, %v1515, 0
        %v1530 = vsel %vm1522, %v1516, 0
        %v1533 = vsel %vm1522, %v1517, 0
        %v1536 = vsel %vm1522, %v1518, 0
        %v1539 = vsel %vm1522, %v1519, 0
        %v1542 = vsel %vm1522, %v1520, 0
        %v1545 = vsel %vm1522, %v1521, 0
        %1547 = vmatpush.bf16.msra.mxu0 0
        %1548 = vmatpush.bf16.msra.mxu0 0
        %1549 = vmatpush.bf16.msra.mxu0 0
        %1550 = vmatpush.bf16.msra.mxu0 0
        %1551 = vmatpush.bf16.msra.mxu0 %v370
        %1552 = vmatpush.bf16.msra.mxu0 %v369
        %1553 = vmatpush.bf16.msra.mxu0 %v368
        %1554 = vmatpush.bf16.msra.mxu0 %v367
        %1555 = vmatmul.bf16.gmra.mxu0 %v1524
        %v1556 = vpop.f32.mrf.mxu0
        %v1557 = vadd.f32 0.0, %v1556
        %v1558 = vpop.f32.mrf.mxu0
        %v1559 = vadd.f32 0.0, %v1558
        %1560 = vmatmul.bf16.gmra.mxu0 %v1527
        %v1561 = vpop.f32.mrf.mxu0
        %v1562 = vadd.f32 0.0, %v1561
        %v1563 = vpop.f32.mrf.mxu0
        %v1564 = vadd.f32 0.0, %v1563
        %1565 = vmatmul.bf16.gmra.mxu0 %v1530
        %v1566 = vpop.f32.mrf.mxu0
        %v1567 = vadd.f32 0.0, %v1566
        %v1568 = vpop.f32.mrf.mxu0
        %v1569 = vadd.f32 0.0, %v1568
        %1570 = vmatmul.bf16.gmra.mxu0 %v1533
        %v1571 = vpop.f32.mrf.mxu0
        %v1572 = vadd.f32 0.0, %v1571
        %v1573 = vpop.f32.mrf.mxu0
        %v1574 = vadd.f32 0.0, %v1573
        %1575 = vmatmul.bf16.gmra.mxu0 %v1536
        %v1576 = vpop.f32.mrf.mxu0
        %v1577 = vadd.f32 0.0, %v1576
        %v1578 = vpop.f32.mrf.mxu0
        %v1579 = vadd.f32 0.0, %v1578
        %1580 = vmatmul.bf16.gmra.mxu0 %v1539
        %v1581 = vpop.f32.mrf.mxu0
        %v1582 = vadd.f32 0.0, %v1581
        %v1583 = vpop.f32.mrf.mxu0
        %v1584 = vadd.f32 0.0, %v1583
        %1585 = vmatmul.bf16.gmra.mxu0 %v1542
        %v1586 = vpop.f32.mrf.mxu0
        %v1587 = vadd.f32 0.0, %v1586
        %v1588 = vpop.f32.mrf.mxu0
        %v1589 = vadd.f32 0.0, %v1588
        %1590 = vmatmul.bf16.gmra.mxu0 %v1545
        %v1591 = vpop.f32.mrf.mxu0
        %v1592 = vadd.f32 0.0, %v1591
        %v1593 = vpop.f32.mrf.mxu0
        %v1594 = vadd.f32 0.0, %v1593
        %1595 = vdwg.mxu0
        %v1596 = vld [vmem:[%s6] sm:$0xff]
        %v1597 = vld [vmem:[%s6 + $0x8] sm:$0xff]
        %v1598 = vld [vmem:[%s6 + $0x10] sm:$0xff]
        %v1599 = vld [vmem:[%s6 + $0x18] sm:$0xff]
        %v1600 = vld [vmem:[%s6 + $0x20] sm:$0xff]
        %v1601 = vld [vmem:[%s6 + $0x28] sm:$0xff]
        %v1602 = vld [vmem:[%s6 + $0x30] sm:$0xff]
        %v1603 = vld [vmem:[%s6 + $0x38] sm:$0xff]
        %v1604 = vld [vmem:[%s6 + $0x40] sm:$0xff]
        %v1605 = vld [vmem:[%s6 + $0x48] sm:$0xff]
        %v1606 = vld [vmem:[%s6 + $0x50] sm:$0xff]
        %v1607 = vld [vmem:[%s6 + $0x58] sm:$0xff]
        %v1608 = vld [vmem:[%s6 + $0x60] sm:$0xff]
        %v1609 = vld [vmem:[%s6 + $0x68] sm:$0xff]
        %v1610 = vld [vmem:[%s6 + $0x70] sm:$0xff]
        %v1611 = vld [vmem:[%s6 + $0x78] sm:$0xff]
        %v1612 = vmul.f32 %v1557, %v1596
        %v1613 = vmul.f32 %v1559, %v1597
        %v1614 = vmul.f32 %v1562, %v1598
        %v1615 = vmul.f32 %v1564, %v1599
        %v1616 = vmul.f32 %v1567, %v1600
        %v1617 = vmul.f32 %v1569, %v1601
        %v1618 = vmul.f32 %v1572, %v1602
        %v1619 = vmul.f32 %v1574, %v1603
        %v1620 = vmul.f32 %v1577, %v1604
        %v1621 = vmul.f32 %v1579, %v1605
        %v1622 = vmul.f32 %v1582, %v1606
        %v1623 = vmul.f32 %v1584, %v1607
        %v1624 = vmul.f32 %v1587, %v1608
        %v1625 = vmul.f32 %v1589, %v1609
        %v1626 = vmul.f32 %v1592, %v1610
        %v1627 = vmul.f32 %v1594, %v1611
        %v1628 = vpack.c.bf16 %v1613, %v1612
        %v1629 = vpack.c.bf16 %v1615, %v1614
        %v1630 = vpack.c.bf16 %v1617, %v1616
        %v1631 = vpack.c.bf16 %v1619, %v1618
        %v1632 = vpack.c.bf16 %v1621, %v1620
        %v1633 = vpack.c.bf16 %v1623, %v1622
        %v1634 = vpack.c.bf16 %v1625, %v1624
        %v1635 = vpack.c.bf16 %v1627, %v1626
        %1636 = vmatpush.bf16.msra.mxu0 %v1635
        %1637 = vmatpush.bf16.msra.mxu0 %v1634
        %1638 = vmatpush.bf16.msra.mxu0 %v1633
        %1639 = vmatpush.bf16.msra.mxu0 %v1632
        %1640 = vmatpush.bf16.msra.mxu0 %v1631
        %1641 = vmatpush.bf16.msra.mxu0 %v1630
        %1642 = vmatpush.bf16.msra.mxu0 %v1629
        %1643 = vmatpush.bf16.msra.mxu0 %v1628
        %1644 = vmatmul.bf16.gmra.mxu0 %v699
        %v1645 = vpop.f32.mrf.mxu0
        %v1646 = vadd.f32 0.0, %v1645
        %v1647 = vpop.f32.mrf.mxu0
        %v1648 = vadd.f32 0.0, %v1647
        %1649 = vmatmul.bf16.gmra.mxu0 %v700
        %v1650 = vpop.f32.mrf.mxu0
        %v1651 = vadd.f32 0.0, %v1650
        %v1652 = vpop.f32.mrf.mxu0
        %v1653 = vadd.f32 0.0, %v1652
        %1654 = vmatmul.bf16.gmra.mxu0 %v701
        %v1655 = vpop.f32.mrf.mxu0
        %v1656 = vadd.f32 0.0, %v1655
        %v1657 = vpop.f32.mrf.mxu0
        %v1658 = vadd.f32 0.0, %v1657
        %1659 = vmatmul.bf16.gmra.mxu0 %v702
        %v1660 = vpop.f32.mrf.mxu0
        %v1661 = vadd.f32 0.0, %v1660
        %v1662 = vpop.f32.mrf.mxu0
        %v1663 = vadd.f32 0.0, %v1662
        %1664 = vdwg.mxu0
        %v1681 = vunpack.c.l.b16 %v1490
        %v1682 = vunpack.c.l.b16 %v1491
        %v1683 = vunpack.c.l.b16 %v1492
        %v1684 = vunpack.c.l.b16 %v1493
        %v1685 = vunpack.c.l.b16 %v1494
        %v1686 = vunpack.c.l.b16 %v1495
        %v1687 = vunpack.c.l.b16 %v1496
        %v1688 = vunpack.c.l.b16 %v1497
        %v1689 = vunpack.c.l.b16 %v1498
        %v1690 = vunpack.c.l.b16 %v1499
        %v1691 = vunpack.c.l.b16 %v1500
        %v1692 = vunpack.c.l.b16 %v1501
        %v1693 = vunpack.c.l.b16 %v1502
        %v1694 = vunpack.c.l.b16 %v1503
        %v1695 = vunpack.c.l.b16 %v1504
        %v1696 = vunpack.c.l.b16 %v1505
        %v1697 = vpack.c.b16 %v1682, %v1681
        %v1698 = vpack.c.b16 %v1684, %v1683
        %v1699 = vpack.c.b16 %v1686, %v1685
        %v1700 = vpack.c.b16 %v1688, %v1687
        %v1701 = vpack.c.b16 %v1690, %v1689
        %v1702 = vpack.c.b16 %v1692, %v1691
        %v1703 = vpack.c.b16 %v1694, %v1693
        %v1704 = vpack.c.b16 %v1696, %v1695
        %1713 = vmatpush.bf16.msra.mxu0 %v1704
        %1714 = vmatpush.bf16.msra.mxu0 %v1703
        %1715 = vmatpush.bf16.msra.mxu0 %v1702
        %1716 = vmatpush.bf16.msra.mxu0 %v1701
        %1717 = vmatpush.bf16.msra.mxu0 %v1700
        %1718 = vmatpush.bf16.msra.mxu0 %v1699
        %1719 = vmatpush.bf16.msra.mxu0 %v1698
        %1720 = vmatpush.bf16.msra.mxu0 %v1697
        %1721 = vmatmul.bf16.gmra.mxu0 %v1486
        %v1722 = vpop.f32.mrf.mxu0
        %v1723 = vadd.f32 1e-06, %v1722
        %v1724 = vpop.f32.mrf.mxu0
        %v1725 = vadd.f32 1e-06, %v1724
        %1726 = vmatmul.bf16.gmra.mxu0 %v1487
        %v1727 = vpop.f32.mrf.mxu0
        %v1728 = vadd.f32 1e-06, %v1727
        %v1729 = vpop.f32.mrf.mxu0
        %v1730 = vadd.f32 1e-06, %v1729
        %1731 = vmatmul.bf16.gmra.mxu0 %v1488
        %v1732 = vpop.f32.mrf.mxu0
        %v1733 = vadd.f32 1e-06, %v1732
        %v1734 = vpop.f32.mrf.mxu0
        %v1735 = vadd.f32 1e-06, %v1734
        %1736 = vmatmul.bf16.gmra.mxu0 %v1489
        %v1737 = vpop.f32.mrf.mxu0
        %v1738 = vadd.f32 1e-06, %v1737
        %v1739 = vpop.f32.mrf.mxu0
        %v1740 = vadd.f32 1e-06, %v1739
        %1741 = vdwg.mxu0
        %v1742 = vrcp.pop %v1723
        %v1743 = vrcp.pop %v1725
        %v1744 = vrcp.pop %v1728
        %v1745 = vrcp.pop %v1730
        %v1746 = vrcp.pop %v1733
        %v1747 = vrcp.pop %v1735
        %v1748 = vrcp.pop %v1738
        %v1749 = vrcp.pop %v1740
        %v1750 = vmul.f32 %v1646, %v1742
        %v1751 = vmul.f32 %v1648, %v1743
        %v1752 = vmul.f32 %v1651, %v1744
        %v1753 = vmul.f32 %v1653, %v1745
        %v1754 = vmul.f32 %v1656, %v1746
        %v1755 = vmul.f32 %v1658, %v1747
        %v1756 = vmul.f32 %v1661, %v1748
        %v1757 = vmul.f32 %v1663, %v1749
        %v1758 = vadd.f32 %v1750, %v1449
        %v1759 = vadd.f32 %v1751, %v1450
        %v1760 = vadd.f32 %v1752, %v1451
        %v1761 = vadd.f32 %v1753, %v1452
        %v1762 = vadd.f32 %v1754, %v1453
        %v1763 = vadd.f32 %v1755, %v1454
        %v1764 = vadd.f32 %v1756, %v1455
        %v1765 = vadd.f32 %v1757, %v1456
        %v1766 = vld [vmem:[%s8] sm:$0x1]
        %v1768 = vperm.slane %v1766, 0
        %v1770 = vadd.f32 %v1758, %v1768
        %v1771 = vadd.f32 %v1759, %v1768
        %v1772 = vadd.f32 %v1760, %v1768
        %v1773 = vadd.f32 %v1761, %v1768
        %v1774 = vadd.f32 %v1762, %v1768
        %v1775 = vadd.f32 %v1763, %v1768
        %v1776 = vadd.f32 %v1764, %v1768
        %v1777 = vadd.f32 %v1765, %v1768
        %1778 = vst [vmem:[%s352] sm:$0xff] %v1770
        %1779 = vst [vmem:[%s352 + $0x8] sm:$0xff] %v1771
        %1780 = vst [vmem:[%s352 + $0x10] sm:$0xff] %v1772
        %1781 = vst [vmem:[%s352 + $0x18] sm:$0xff] %v1773
        %1782 = vst [vmem:[%s352 + $0x20] sm:$0xff] %v1774
        %1783 = vst [vmem:[%s352 + $0x28] sm:$0xff] %v1775
        %1784 = vst [vmem:[%s352 + $0x30] sm:$0xff] %v1776
        %1785 = vst [vmem:[%s352 + $0x38] sm:$0xff] %v1777
        %s1786 = sand.u32 %s247, 1
        %s1787 = scalar_lea.sflag [#allocation3], %s1786
        %s1788 = sand.u32 %s247, 1
        %s1789 = smul.addr %s1788, 64
        %s1790 = scalar_lea.vmem [#allocation2], %s1789
        // Predicated region
        $region61: #{linear_attention_apply.1} parent=59 // pred_check
          %p1791 = pneg %p257
        $region62: #{linear_attention_apply.1} parent=59 // pred_check_branch
          %1793 = sbr.rel (%p1791) target = $region64
        $region63: #{linear_attention_apply.1} parent=59 // pred_region
          %1795 = vsyncadd %s1787, 0
          %s1796 = smul.addr %s24, 8
          %s1797 = smul.addr %s1796, 8
          %s1798 = scalar_lea.hbm %s10, %s1797
          %s1799 = sshll.u32 %s1790, 4
          %s1800 = int_to_ptr.vmem [resolvable:$true] %s1799
          %s1801 = sshll.u32 %s1798, 4
          %s1802 = int_to_ptr.hbm [resolvable:$true] %s1801
          %1807 = dma.vmem_to_hbm [thread:$0]  %s1800, 1024, %s1802, %s1787, 128, 128, 8
        $region64: #{linear_attention_apply.1} parent=59 // pred_fallthru
          _
      $region60: #{linear_attention_apply.1} parent=5 // pred_fallthru
        _
      %p1808 = scmp.le.s32.totalorder 2, %s19
      // Predicated region
      $region65: #{linear_attention_apply.1} parent=5 // pred_check
        %p1809 = pneg %p1808
      $region66: #{linear_attention_apply.1} parent=5 // pred_check_branch
        %1811 = sbr.rel (%p1809) target = $region68
      $region67: #{linear_attention_apply.1} parent=5 // pred_region
        %s1812 = ssub.s32 %s19, 2
        // Predicated region
        $region69: #{linear_attention_apply.1} parent=67 // pred_check
          %p1813 = pneg %p263
        $region70: #{linear_attention_apply.1} parent=67 // pred_check_branch
          %1815 = sbr.rel (%p1813) target = $region72
        $region71: #{linear_attention_apply.1} parent=67 // pred_region
          %s1816 = sand.u32 %s248, 1
          %s1817 = scalar_lea.sflag [#allocation3], %s1816
          %s1818 = sand.u32 %s248, 1
          %s1819 = smul.addr %s1818, 64
          %s1820 = scalar_lea.vmem [#allocation2], %s1819
          %1822 = dma.done %s1817, 1024
        $region72: #{linear_attention_apply.1} parent=67 // pred_fallthru
          _
      $region68: #{linear_attention_apply.1} parent=5 // pred_fallthru
        _
    $region6: #{linear_attention_apply.1} parent=1 // loop_footer
      %s23 = sadd.s32 1, %s19
    $region7: #{linear_attention_apply.1} parent=1 // loop_footer_branch
      %18 = sbr.rel target = $region3
    $region8: #{linear_attention_apply.1} parent=1 // loop_exit
      _
    %1823 = vsyncpa [#allocation3], 1
    %s1824 = scalar_lea.sflag [#allocation3], 1
    %1825 = vsyncpa %s1824, 1

</llo_original>
